<compile_context>
chip_gen: v7x
topology: tpu7x:2x2x1
jax: 0.10.0
libtpu: 0.0.40
codegen_flags: <defaults>
</compile_context>

<pallas_src>
import functools

import jax
import jax.numpy as jnp
from jax.experimental import pallas as pl
from jax.experimental.pallas import tpu as pltpu


def _graph_laplacian_kernel(ea_ref, w1_ref, b1_ref, w2_ref, b2_ref,
                            col_ref, rowT_ref, dis_c_ref, dis_r_ref,
                            l_ref, *, edge_attr_dim):
    TE = ea_ref.shape[0]
    Npad = l_ref.shape[0]
    TN = l_ref.shape[1]
    n = pl.program_id(0)            # output column block   ("parallel")
    e = pl.program_id(1)            # edge tile (reduction)  ("arbitrary")

    @pl.when(e == 0)
    def _init():
        l_ref[...] = jnp.zeros_like(l_ref)

    # ---- Edge-weight MLP: Linear(De->32) -> ReLU -> Linear(32->1) -> Sigmoid
    # K=1 / N=1 matmuls stay off the MXU (VPU broadcast FMA + lane reduce);
    # sigmoid rides the EUP.
    if edge_attr_dim == 1:
        h = ea_ref[...] * w1_ref[...] + b1_ref[...]                  # [TE, H]
    else:
        h = jnp.dot(ea_ref[...], w1_ref[...],
                    preferred_element_type=jnp.float32) + b1_ref[...]
    h = jnp.maximum(h, 0.0)
    logits = jnp.sum(h * w2_ref[...], axis=-1, keepdims=True) + b2_ref[...]
    w = jax.nn.sigmoid(logits)                                       # [TE, 1]

    # ---- One-hot encodings (scatter-add -> MXU matmul).  Padded edges carry
    # index -1, never match, and contribute nothing.
    # Column one-hot for this column block with the weight folded in (fused
    # cast+scale via jnp.where).
    lane_ids = jax.lax.broadcasted_iota(jnp.int32, (TE, TN), 1) + n * TN
    cw = jnp.where(lane_ids == col_ref[...], w, 0.0)                 # [TE, TN]
    # Row one-hot built directly in sublane layout [Npad, TE] so the matmul
    # below needs no lhs transpose on the MXU feed path.
    sub_ids = jax.lax.broadcasted_iota(jnp.int32, (Npad, TE), 0)
    rt = (sub_ids == rowT_ref[...]).astype(jnp.float32)              # [Npad, TE]

    # adj[i, j] += sum_e w[e] * [row_e == i] * [col_e == j], accumulated
    # straight into the resident output block.
    l_ref[...] += jnp.dot(rt, cw, preferred_element_type=jnp.float32)

    @pl.when(e == pl.num_programs(1) - 1)
    def _finalize():
        row_ids = jax.lax.broadcasted_iota(jnp.int32, (Npad, TN), 0)
        col_ids = jax.lax.broadcasted_iota(jnp.int32, (Npad, TN), 1) + n * TN
        diag = (row_ids == col_ids).astype(jnp.float32)
        adj = l_ref[...] + diag                    # self-loop weights (=1)
        # L = I - D^-1/2 A D^-1/2 via broadcast scaling (no N^3 matmuls).
        l_ref[...] = diag - adj * dis_c_ref[...] * dis_r_ref[...]


def _round_up(x, m):
    return ((x + m - 1) // m) * m


def _vmem_limit_bytes(Npad, TN, edge_tile, De):
    out_bytes = 2 * Npad * TN * 4                        # resident L block (x2 buffers)
    onehots = (Npad * edge_tile + edge_tile * TN) * 4    # rt / cw intermediates
    edge_in = 2 * edge_tile * (max(De, 128) + 256) * 4   # ea / col / rowT (lane-padded)
    vectors = 2 * (Npad + max(TN, 128)) * 4 * 2          # dis_c / dis_r
    small = 8 * 128 * 4 * 4 * 2                          # w1/b1/w2/b2 padded tiles
    slack = 8 << 20
    total = out_bytes + onehots + edge_in + vectors + small + slack
    return int(min(max(total, 32 << 20), 56 << 20))      # <=56 MiB: v7x-safe


def graph_laplacian(edge_index, edge_attr, params, num_nodes, *,
                    edge_tile=256, n_tile=None):
    """params = (w1 [32, De], b1 [32], w2 [1, 32], b2 [1])  (PyTorch layout)."""
    # TODO(synk): edge_attr=None branch of the module (unit edge weights) is
    # not implemented; the kernel assumes edge_attr is provided.
    w1, b1, w2, b2 = params
    E = edge_index.shape[1]
    De = edge_attr.shape[1]
    H = w1.shape[0]

    Npad = _round_up(max(num_nodes, 1), 128)
    if n_tile is None:
        n_tile = min(Npad, 512)
    TN = n_tile
    assert Npad % TN == 0 and TN % 128 == 0
    Epad = _round_up(max(E, 1), edge_tile)
    n_edge_tiles = Epad // edge_tile
    n_col_tiles = Npad // TN

    row = edge_index[0].astype(jnp.int32)
    col = edge_index[1].astype(jnp.int32)
    ea = edge_attr.astype(jnp.float32)

    # Degree of `col` (+1 self loop per node) is weight-independent; compute it
    # here with a trivial segment-sum and hand D^-1/2 to the kernel as tiny
    # row/column vectors.  deg >= 1 always, so no inf guard is needed.
    deg = jnp.ones((Npad,), jnp.float32).at[col].add(1.0)
    dis = deg ** -0.5
    dis_r = dis.reshape(1, Npad)
    dis_c = dis.reshape(Npad, 1)

    pad_e = Epad - E
    col2 = col.reshape(E, 1)
    rowT = row.reshape(1, E)
    if pad_e:
        ea = jnp.concatenate([ea, jnp.zeros((pad_e, De), jnp.float32)], 0)
        col2 = jnp.concatenate([col2, jnp.full((pad_e, 1), -1, jnp.int32)], 0)
        rowT = jnp.concatenate([rowT, jnp.full((1, pad_e), -1, jnp.int32)], 1)

    w1t = jnp.transpose(w1).astype(jnp.float32)     # [De, H]
    b1r = b1.reshape(1, H).astype(jnp.float32)      # [1, H]
    w2r = w2.reshape(1, H).astype(jnp.float32)      # [1, H]
    b2r = b2.reshape(1, 1).astype(jnp.float32)      # [1, 1]

    kernel = functools.partial(_graph_laplacian_kernel, edge_attr_dim=De)

    l_full = pl.pallas_call(
        kernel,
        out_shape=jax.ShapeDtypeStruct((Npad, Npad), jnp.float32),
        grid_spec=pltpu.PrefetchScalarGridSpec(
            num_scalar_prefetch=0,
            grid=(n_col_tiles, n_edge_tiles),
            in_specs=[
                pl.BlockSpec((edge_tile, De), lambda n, e: (e, 0)),   # edge_attr
                pl.BlockSpec((De, H), lambda n, e: (0, 0)),           # w1^T
                pl.BlockSpec((1, H), lambda n, e: (0, 0)),            # b1
                pl.BlockSpec((1, H), lambda n, e: (0, 0)),            # w2 row
                pl.BlockSpec((1, 1), lambda n, e: (0, 0)),            # b2
                pl.BlockSpec((edge_tile, 1), lambda n, e: (e, 0)),    # col (sublane)
                pl.BlockSpec((1, edge_tile), lambda n, e: (0, e)),    # row (lane)
                pl.BlockSpec((Npad, 1), lambda n, e: (0, 0)),         # D^-1/2 (col vec)
                pl.BlockSpec((1, TN), lambda n, e: (0, n)),           # D^-1/2 (row vec)
            ],
            out_specs=pl.BlockSpec((Npad, TN), lambda n, e: (0, n)),
        ),
        compiler_params=pltpu.CompilerParams(
            dimension_semantics=("parallel", "arbitrary"),
            vmem_limit_bytes=_vmem_limit_bytes(Npad, TN, edge_tile, De),
        ),
    )(ea, w1t, b1r, w2r, b2r, col2, rowT, dis_c, dis_r)

    return l_full[:num_nodes, :num_nodes]


def graph_laplacian_ref(edge_index, edge_attr, params, num_nodes):
    """Pure-JAX reference replicating the PyTorch module semantics."""
    w1, b1, w2, b2 = params
    h = jnp.maximum(edge_attr @ w1.T + b1, 0.0)
    w = jax.nn.sigmoid(h @ w2.T + b2)[:, 0]
    row, col = edge_index[0], edge_index[1]
    loop = jnp.arange(num_nodes, dtype=row.dtype)
    row = jnp.concatenate([row, loop])
    col = jnp.concatenate([col, loop])
    w = jnp.concatenate([w, jnp.ones(num_nodes, w.dtype)])
    deg = jnp.zeros(num_nodes, w.dtype).at[col].add(1.0)
    dis = jnp.where(deg > 0, deg ** -0.5, 0.0)
    w = dis[row] * w * dis[col]
    adj = jnp.zeros((num_nodes, num_nodes), w.dtype).at[row, col].add(w)
    return jnp.eye(num_nodes, dtype=w.dtype) - adj


if __name__ == "__main__":
    key = jax.random.PRNGKey(0)
    k1, k2, k3, k4, k5, k6, k7, k8, k9, k10 = jax.random.split(key, 10)

    edge_attr_dim = 1
    hidden = 32

    # Deterministic parameter init (PyTorch nn.Linear layout: [out, in]).
    w1 = jax.random.normal(k1, (hidden, edge_attr_dim), jnp.float32) * 0.5
    b1 = jax.random.normal(k2, (hidden,), jnp.float32) * 0.1
    w2 = jax.random.normal(k3, (1, hidden), jnp.float32) * 0.5
    b2 = jax.random.normal(k4, (1,), jnp.float32) * 0.1
    params = (w1, b1, w2, b2)

    # Case 1: small graph (single edge tile, single column block).
    num_nodes, num_edges = 16, 24
    edge_index = jax.random.randint(k5, (2, num_edges), 0, num_nodes, jnp.int32)
    edge_attr = jax.random.normal(k6, (num_edges, edge_attr_dim), jnp.float32)
    L = jax.block_until_ready(graph_laplacian(edge_index, edge_attr, params, num_nodes))
    L_ref = graph_laplacian_ref(edge_index, edge_attr, params, num_nodes)
    assert L.shape == (num_nodes, num_nodes)
    assert jnp.allclose(L, L_ref, atol=1e-5, rtol=1e-5), (
        f"case1 max abs err = {jnp.max(jnp.abs(L - L_ref))}")

    # Case 2: exercises the multi-tile edge-reduction axis (3 tiles of 256).
    num_nodes2, num_edges2 = 40, 600
    edge_index2 = jax.random.randint(k7, (2, num_edges2), 0, num_nodes2, jnp.int32)
    edge_attr2 = jax.random.normal(k8, (num_edges2, edge_attr_dim), jnp.float32)
    L2 = jax.block_until_ready(graph_laplacian(edge_index2, edge_attr2, params, num_nodes2))
    L2_ref = graph_laplacian_ref(edge_index2, edge_attr2, params, num_nodes2)
    assert L2.shape == (num_nodes2, num_nodes2)
    assert jnp.allclose(L2, L2_ref, atol=1e-5, rtol=1e-5), (
        f"case2 max abs err = {jnp.max(jnp.abs(L2 - L2_ref))}")

    # Case 3: exercises both grid axes (2 column blocks x 2 edge tiles).
    num_nodes3, num_edges3 = 200, 500
    edge_index3 = jax.random.randint(k9, (2, num_edges3), 0, num_nodes3, jnp.int32)
    edge_attr3 = jax.random.normal(k10, (num_edges3, edge_attr_dim), jnp.float32)
    L3 = jax.block_until_ready(
        graph_laplacian(edge_index3, edge_attr3, params, num_nodes3, n_tile=128))
    L3_ref = graph_laplacian_ref(edge_index3, edge_attr3, params, num_nodes3)
    assert L3.shape == (num_nodes3, num_nodes3)
    assert jnp.allclose(L3, L3_ref, atol=1e-5, rtol=1e-5), (
        f"case3 max abs err = {jnp.max(jnp.abs(L3 - L3_ref))}")

    print("KERNEL_OK")
</pallas_src>

<mosaic_0001>
module attributes {stable_mosaic.version = 11 : i64} {
  func.func @_graph_laplacian_kernel(%arg0: i32, %arg1: i32, %arg2: memref<256x1xf32, #tpu.memory_space<vmem>>, %arg3: memref<1x32xf32, #tpu.memory_space<vmem>>, %arg4: memref<1x32xf32, #tpu.memory_space<vmem>>, %arg5: memref<1x32xf32, #tpu.memory_space<vmem>>, %arg6: memref<1x1xf32, #tpu.memory_space<vmem>>, %arg7: memref<256x1xi32, #tpu.memory_space<vmem>>, %arg8: memref<1x256xi32, #tpu.memory_space<vmem>>, %arg9: memref<128x1xf32, #tpu.memory_space<vmem>>, %arg10: memref<1x128xf32, #tpu.memory_space<vmem>>, %arg11: memref<128x128xf32, #tpu.memory_space<vmem>>) attributes {dimension_semantics = [#tpu.dimension_semantics<parallel>, #tpu.dimension_semantics<arbitrary>], iteration_bounds = array<i64: 1, 1>, scalar_prefetch = 0 : i64, scratch_operands = 0 : i64, tpu.core_type = #tpu.core_type<tc>, window_params = [{transform_indices = @transform_0, window_bounds = array<i64: 256, 1>}, {pipeline_mode = #tpu.pipeline_mode<synchronous>, transform_indices = @transform_1, window_bounds = array<i64: 1, 32>}, {pipeline_mode = #tpu.pipeline_mode<synchronous>, transform_indices = @transform_2, window_bounds = array<i64: 1, 32>}, {pipeline_mode = #tpu.pipeline_mode<synchronous>, transform_indices = @transform_3, window_bounds = array<i64: 1, 32>}, {pipeline_mode = #tpu.pipeline_mode<synchronous>, transform_indices = @transform_4, window_bounds = array<i64: 1, 1>}, {transform_indices = @transform_5, window_bounds = array<i64: 256, 1>}, {transform_indices = @transform_6, window_bounds = array<i64: 1, 256>}, {pipeline_mode = #tpu.pipeline_mode<synchronous>, transform_indices = @transform_7, window_bounds = array<i64: 128, 1>}, {transform_indices = @transform_8, window_bounds = array<i64: 1, 128>}, {transform_indices = @transform_9, window_bounds = array<i64: 128, 128>}]} {
    %c0_i32 = arith.constant 0 : i32
    %0 = arith.cmpi eq, %arg1, %c0_i32 : i32
    %1 = arith.extui %0 : i1 to i32
    %c0_i32_0 = arith.constant 0 : i32
    %2 = arith.cmpi ne, %1, %c0_i32_0 : i32
    scf.if %2 {
      %cst_24 = arith.constant 0.000000e+00 : f32
      %50 = vector.broadcast %cst_24 : f32 to vector<128x128xf32>
      %c0_25 = arith.constant 0 : index
      %c0_26 = arith.constant 0 : index
      %51 = vector.load %arg11[%c0_25, %c0_26] : memref<128x128xf32, #tpu.memory_space<vmem>>, vector<128x128xf32>
      tpu.vector_store %arg11[%c0_25, %c0_26], %50 {strides = array<i32>} : memref<128x128xf32, #tpu.memory_space<vmem>>, vector<128x128xf32>,
    } else {
    }
    %c0 = arith.constant 0 : index
    %c0_1 = arith.constant 0 : index
    %3 = vector.load %arg2[%c0, %c0_1] : memref<256x1xf32, #tpu.memory_space<vmem>>, vector<256x1xf32>
    %c0_2 = arith.constant 0 : index
    %c0_3 = arith.constant 0 : index
    %4 = vector.load %arg3[%c0_2, %c0_3] : memref<1x32xf32, #tpu.memory_space<vmem>>, vector<1x32xf32>
    %5 = vector.broadcast %3 : vector<256x1xf32> to vector<256x32xf32>
    %6 = vector.broadcast %4 : vector<1x32xf32> to vector<256x32xf32>
    %7 = arith.mulf %5, %6 : vector<256x32xf32>
    %c0_4 = arith.constant 0 : index
    %c0_5 = arith.constant 0 : index
    %8 = vector.load %arg4[%c0_4, %c0_5] : memref<1x32xf32, #tpu.memory_space<vmem>>, vector<1x32xf32>
    %9 = vector.broadcast %8 : vector<1x32xf32> to vector<256x32xf32>
    %10 = arith.addf %7, %9 : vector<256x32xf32>
    %cst = arith.constant 0.000000e+00 : f32
    %11 = vector.broadcast %cst : f32 to vector<256x32xf32>
    %12 = arith.maximumf %10, %11 : vector<256x32xf32>
    %c0_6 = arith.constant 0 : index
    %c0_7 = arith.constant 0 : index
    %13 = vector.load %arg5[%c0_6, %c0_7] : memref<1x32xf32, #tpu.memory_space<vmem>>, vector<1x32xf32>
    %14 = vector.broadcast %13 : vector<1x32xf32> to vector<256x32xf32>
    %15 = arith.mulf %12, %14 : vector<256x32xf32>
    %cst_8 = arith.constant dense<0.000000e+00> : vector<256xf32>
    %16 = vector.multi_reduction <add>, %15, %cst_8 [1] : vector<256x32xf32> to vector<256xf32>
    %17 = vector.shape_cast %16 : vector<256xf32> to vector<256x1xf32>
    %c0_9 = arith.constant 0 : index
    %c0_10 = arith.constant 0 : index
    %18 = vector.load %arg6[%c0_9, %c0_10] : memref<1x1xf32, #tpu.memory_space<vmem>>, vector<1x1xf32>
    %19 = vector.broadcast %18 : vector<1x1xf32> to vector<256x1xf32>
    %20 = arith.addf %17, %19 : vector<256x1xf32>
    %21 = arith.negf %20 : vector<256x1xf32>
    %22 = math.exp %21 : vector<256x1xf32>
    %cst_11 = arith.constant 1.000000e+00 : f32
    %23 = vector.broadcast %cst_11 : f32 to vector<256x1xf32>
    %24 = arith.addf %23, %22 : vector<256x1xf32>
    %25 = arith.divf %23, %24 : vector<256x1xf32>
    %26 = tpu.iota {dimensions = array<i32: 1>} : vector<256x128xi32>
    %c128_i32 = arith.constant 128 : i32
    %27 = arith.muli %arg0, %c128_i32 : i32
    %28 = vector.broadcast %27 : i32 to vector<256x128xi32>
    %29 = arith.addi %26, %28 : vector<256x128xi32>
    %c0_12 = arith.constant 0 : index
    %c0_13 = arith.constant 0 : index
    %30 = vector.load %arg7[%c0_12, %c0_13] : memref<256x1xi32, #tpu.memory_space<vmem>>, vector<256x1xi32>
    %31 = vector.broadcast %30 : vector<256x1xi32> to vector<256x128xi32>
    %32 = arith.cmpi eq, %29, %31 : vector<256x128xi32>
    %cst_14 = arith.constant 0.000000e+00 : f32
    %33 = vector.shape_cast %25 : vector<256x1xf32> to vector<256x1xf32>
    %34 = vector.broadcast %33 : vector<256x1xf32> to vector<256x128xf32>
    %35 = vector.broadcast %cst_14 : f32 to vector<256x128xf32>
    %36 = arith.select %32, %34, %35 : vector<256x128xi1>, vector<256x128xf32>
    %37 = tpu.iota {dimensions = array<i32: 0>} : vector<128x256xi32>
    %c0_15 = arith.constant 0 : index
    %c0_16 = arith.constant 0 : index
    %38 = vector.load %arg8[%c0_15, %c0_16] : memref<1x256xi32, #tpu.memory_space<vmem>>, vector<1x256xi32>
    %39 = vector.broadcast %38 : vector<1x256xi32> to vector<128x256xi32>
    %40 = arith.cmpi eq, %37, %39 : vector<128x256xi32>
    %41 = arith.extui %40 : vector<128x256xi1> to vector<128x256xi32>
    %42 = arith.sitofp %41 : vector<128x256xi32> to vector<128x256xf32>
    %c0_17 = arith.constant 0 : index
    %c0_18 = arith.constant 0 : index
    %43 = vector.load %arg11[%c0_17, %c0_18] : memref<128x128xf32, #tpu.memory_space<vmem>>, vector<128x128xf32>
    %cst_19 = arith.constant dense<0.000000e+00> : vector<128x128xf32>
    %44 = tpu.matmul %42, %36, %cst_19 {dimension_numbers = #tpu.dot_dimension_numbers<[1], [0], [0], [1], [0, 0, 1, 1], [], []>} : vector<128x256xf32>, vector<256x128xf32>, vector<128x128xf32> -> vector<128x128xf32>
    %45 = arith.addf %43, %44 : vector<128x128xf32>
    %c0_20 = arith.constant 0 : index
    %c0_21 = arith.constant 0 : index
    %46 = vector.load %arg11[%c0_20, %c0_21] : memref<128x128xf32, #tpu.memory_space<vmem>>, vector<128x128xf32>
    tpu.vector_store %arg11[%c0_20, %c0_21], %45 {strides = array<i32>} : memref<128x128xf32, #tpu.memory_space<vmem>>, vector<128x128xf32>,
    %c0_i32_22 = arith.constant 0 : i32
    %47 = arith.cmpi eq, %arg1, %c0_i32_22 : i32
    %48 = arith.extui %47 : i1 to i32
    %c0_i32_23 = arith.constant 0 : i32
    %49 = arith.cmpi ne, %48, %c0_i32_23 : i32
    scf.if %49 {
      %50 = tpu.iota {dimensions = array<i32: 0>} : vector<128x128xi32>
      %51 = tpu.iota {dimensions = array<i32: 1>} : vector<128x128xi32>
      %c128_i32_24 = arith.constant 128 : i32
      %52 = arith.muli %arg0, %c128_i32_24 : i32
      %53 = vector.broadcast %52 : i32 to vector<128x128xi32>
      %54 = arith.addi %51, %53 : vector<128x128xi32>
      %55 = arith.cmpi eq, %50, %54 : vector<128x128xi32>
      %56 = arith.extui %55 : vector<128x128xi1> to vector<128x128xi32>
      %57 = arith.sitofp %56 : vector<128x128xi32> to vector<128x128xf32>
      %c0_25 = arith.constant 0 : index
      %c0_26 = arith.constant 0 : index
      %58 = vector.load %arg11[%c0_25, %c0_26] : memref<128x128xf32, #tpu.memory_space<vmem>>, vector<128x128xf32>
      %59 = arith.addf %58, %57 : vector<128x128xf32>
      %c0_27 = arith.constant 0 : index
      %c0_28 = arith.constant 0 : index
      %60 = vector.load %arg9[%c0_27, %c0_28] : memref<128x1xf32, #tpu.memory_space<vmem>>, vector<128x1xf32>
      %61 = vector.broadcast %60 : vector<128x1xf32> to vector<128x128xf32>
      %62 = arith.mulf %59, %61 : vector<128x128xf32>
      %c0_29 = arith.constant 0 : index
      %c0_30 = arith.constant 0 : index
      %63 = vector.load %arg10[%c0_29, %c0_30] : memref<1x128xf32, #tpu.memory_space<vmem>>, vector<1x128xf32>
      %64 = vector.broadcast %63 : vector<1x128xf32> to vector<128x128xf32>
      %65 = arith.mulf %62, %64 : vector<128x128xf32>
      %66 = arith.subf %57, %65 : vector<128x128xf32>
      %c0_31 = arith.constant 0 : index
      %c0_32 = arith.constant 0 : index
      %67 = vector.load %arg11[%c0_31, %c0_32] : memref<128x128xf32, #tpu.memory_space<vmem>>, vector<128x128xf32>
      tpu.vector_store %arg11[%c0_31, %c0_32], %66 {strides = array<i32>} : memref<128x128xf32, #tpu.memory_space<vmem>>, vector<128x128xf32>,
    } else {
    }
    return
  }
  func.func @transform_0(%arg0: i32, %arg1: i32) -> (i32, i32) {
    %c0_i32 = arith.constant 0 : i32
    %c0_i32_0 = arith.constant 0 : i32
    return %arg1, %c0_i32 : i32, i32
  }
  func.func @transform_1(%arg0: i32, %arg1: i32) -> (i32, i32) {
    %c0_i32 = arith.constant 0 : i32
    %c0_i32_0 = arith.constant 0 : i32
    %c0_i32_1 = arith.constant 0 : i32
    return %c0_i32, %c0_i32_0 : i32, i32
  }
  func.func @transform_2(%arg0: i32, %arg1: i32) -> (i32, i32) {
    %c0_i32 = arith.constant 0 : i32
    %c0_i32_0 = arith.constant 0 : i32
    %c0_i32_1 = arith.constant 0 : i32
    return %c0_i32, %c0_i32_0 : i32, i32
  }
  func.func @transform_3(%arg0: i32, %arg1: i32) -> (i32, i32) {
    %c0_i32 = arith.constant 0 : i32
    %c0_i32_0 = arith.constant 0 : i32
    %c0_i32_1 = arith.constant 0 : i32
    return %c0_i32, %c0_i32_0 : i32, i32
  }
  func.func @transform_4(%arg0: i32, %arg1: i32) -> (i32, i32) {
    %c0_i32 = arith.constant 0 : i32
    %c0_i32_0 = arith.constant 0 : i32
    %c0_i32_1 = arith.constant 0 : i32
    return %c0_i32, %c0_i32_0 : i32, i32
  }
  func.func @transform_5(%arg0: i32, %arg1: i32) -> (i32, i32) {
    %c0_i32 = arith.constant 0 : i32
    %c0_i32_0 = arith.constant 0 : i32
    return %arg1, %c0_i32 : i32, i32
  }
  func.func @transform_6(%arg0: i32, %arg1: i32) -> (i32, i32) {
    %c0_i32 = arith.constant 0 : i32
    %c0_i32_0 = arith.constant 0 : i32
    return %c0_i32, %arg1 : i32, i32
  }
  func.func @transform_7(%arg0: i32, %arg1: i32) -> (i32, i32) {
    %c0_i32 = arith.constant 0 : i32
    %c0_i32_0 = arith.constant 0 : i32
    %c0_i32_1 = arith.constant 0 : i32
    return %c0_i32, %c0_i32_0 : i32, i32
  }
  func.func @transform_8(%arg0: i32, %arg1: i32) -> (i32, i32) {
    %c0_i32 = arith.constant 0 : i32
    %c0_i32_0 = arith.constant 0 : i32
    return %c0_i32, %arg0 : i32, i32
  }
  func.func @transform_9(%arg0: i32, %arg1: i32) -> (i32, i32) {
    %c0_i32 = arith.constant 0 : i32
    %c0_i32_0 = arith.constant 0 : i32
    return %c0_i32, %arg0 : i32, i32
  }
}

</mosaic_0001>

<llo_original>
// kernel: tpu_custom_call.1
$region0: #{tpu_custom_call.1}
  #allocation0 [shape = 'u32[]', space=smem, size = 0x4, offset = 0x4, fixed_abs, tag = 'smem constant byte address 0x4 - core index']
  #allocation1 [shape = 'u32[144,128]{1,0:T(1,128)}', space=vmem, size = 0x12000, scoped, tag = 'internal scratch']
  #allocation2 [shape = 'f32[1,1]{1,0:T(1,128)S(1)}', space=vmem, size = 0x200, scoped, tag = 'scoped memory for tpu_custom_call.1']
  %s0 = inlined_call_operand.vmem [shape: f32[256,1], index: 0, kind: input, shape index: {}]
  %s1 = inlined_call_operand.vmem [shape: f32[1,32], index: 1, kind: input, shape index: {}]
  %s2 = inlined_call_operand.vmem [shape: f32[1,32], index: 2, kind: input, shape index: {}]
  %s3 = inlined_call_operand.vmem [shape: f32[1,32], index: 3, kind: input, shape index: {}]
  %s4 = inlined_call_operand.<no memory space> [shape: f32[1,1], index: 4, kind: input, shape index: {}]
  %s5 = inlined_call_operand.vmem [shape: s32[256,1], index: 5, kind: input, shape index: {}]
  %s6 = inlined_call_operand.vmem [shape: s32[1,256], index: 6, kind: input, shape index: {}]
  %s7 = inlined_call_operand.vmem [shape: f32[128,1], index: 7, kind: input, shape index: {}]
  %s8 = inlined_call_operand.vmem [shape: f32[1,128], index: 8, kind: input, shape index: {}]
  %s9 = inlined_call_operand.hbm [shape: f32[128,128], index: 9, kind: output, shape index: {}]
  %s10 = sld [smem:[#allocation0]]
  $region54: #{tpu_custom_call.1} parent=0
    _
  %s12 = ssub.s32 1, %s10
  %s13 = scalar_select 0, %s12, %s10
  %v14 = vstv %s4
  %15 = vst [vmem:[#allocation2] sm:$0x1] %v14
  $region1: #{tpu_custom_call.1} parent=0
    #allocation3 [shape = 'u8[65536]{0}', space=vmem, size = 0x10000, scoped, tag = 'output window, operand 0, single buffered']
    #allocation4 [shape = 's32[1]{0}', space=sflag, size = 0x4, scoped, tag = 'scoped memory for tpu_custom_call.1']
    %16 = vsyncpa [#allocation4], 0
    // Predicated region
    $region2: #{tpu_custom_call.1} parent=1 // pred_check
      _
    $region3: #{tpu_custom_call.1} parent=1 // pred_check_branch
      %18 = sbr.rel (0) target = $region5
    $region4: #{tpu_custom_call.1} parent=1 // pred_region
      _
    $region5: #{tpu_custom_call.1} parent=1 // pred_fallthru
      _
    // Predicated region
    $region6: #{tpu_custom_call.1} parent=1 // pred_check
      _
    $region7: #{tpu_custom_call.1} parent=1 // pred_check_branch
      %20 = sbr.rel (0) target = $region9
    $region8: #{tpu_custom_call.1} parent=1 // pred_region
      _
    $region9: #{tpu_custom_call.1} parent=1 // pred_fallthru
      _
    // Predicated region
    $region10: #{tpu_custom_call.1} parent=1 // pred_check
      _
    $region11: #{tpu_custom_call.1} parent=1 // pred_check_branch
      %22 = sbr.rel (0) target = $region13
    $region12: #{tpu_custom_call.1} parent=1 // pred_region
      _
    $region13: #{tpu_custom_call.1} parent=1 // pred_fallthru
      _
    // Predicated region
    $region14: #{tpu_custom_call.1} parent=1 // pred_check
      _
    $region15: #{tpu_custom_call.1} parent=1 // pred_check_branch
      %24 = sbr.rel (0) target = $region17
    $region16: #{tpu_custom_call.1} parent=1 // pred_region
      _
    $region17: #{tpu_custom_call.1} parent=1 // pred_fallthru
      _
    // Predicated region
    $region18: #{tpu_custom_call.1} parent=1 // pred_check
      _
    $region19: #{tpu_custom_call.1} parent=1 // pred_check_branch
      %26 = sbr.rel (0) target = $region21
    $region20: #{tpu_custom_call.1} parent=1 // pred_region
      _
    $region21: #{tpu_custom_call.1} parent=1 // pred_fallthru
      _
    // Predicated region
    $region22: #{tpu_custom_call.1} parent=1 // pred_check
      _
    $region23: #{tpu_custom_call.1} parent=1 // pred_check_branch
      %28 = sbr.rel (0) target = $region25
    $region24: #{tpu_custom_call.1} parent=1 // pred_region
      _
    $region25: #{tpu_custom_call.1} parent=1 // pred_fallthru
      _
    // Predicated region
    $region26: #{tpu_custom_call.1} parent=1 // pred_check
      _
    $region27: #{tpu_custom_call.1} parent=1 // pred_check_branch
      %30 = sbr.rel (0) target = $region29
    $region28: #{tpu_custom_call.1} parent=1 // pred_region
      _
    $region29: #{tpu_custom_call.1} parent=1 // pred_fallthru
      _
    // Predicated region
    $region30: #{tpu_custom_call.1} parent=1 // pred_check
      _
    $region31: #{tpu_custom_call.1} parent=1 // pred_check_branch
      %32 = sbr.rel (0) target = $region33
    $region32: #{tpu_custom_call.1} parent=1 // pred_region
      _
    $region33: #{tpu_custom_call.1} parent=1 // pred_fallthru
      _
    // Predicated region
    $region34: #{tpu_custom_call.1} parent=1 // pred_check
      _
    $region35: #{tpu_custom_call.1} parent=1 // pred_check_branch
      %34 = sbr.rel (0) target = $region37
    $region36: #{tpu_custom_call.1} parent=1 // pred_region
      _
    $region37: #{tpu_custom_call.1} parent=1 // pred_fallthru
      _
    %p35 = scmp.eq.s32.totalorder 0, 0
    // Predicated region
    $region38: #{tpu_custom_call.1} parent=1 // pred_check
      %p36 = pneg %p35
    $region39: #{tpu_custom_call.1} parent=1 // pred_check_branch
      %38 = sbr.rel (%p36) target = $region41
    $region40: #{tpu_custom_call.1} parent=1 // pred_region
      %39 = vst [vmem:[#allocation3] sm:$0xff] 0.0
      %40 = vst [vmem:[#allocation3 + $0x8] sm:$0xff] 0.0
      %41 = vst [vmem:[#allocation3 + $0x10] sm:$0xff] 0.0
      %42 = vst [vmem:[#allocation3 + $0x18] sm:$0xff] 0.0
      %43 = vst [vmem:[#allocation3 + $0x20] sm:$0xff] 0.0
      %44 = vst [vmem:[#allocation3 + $0x28] sm:$0xff] 0.0
      %45 = vst [vmem:[#allocation3 + $0x30] sm:$0xff] 0.0
      %46 = vst [vmem:[#allocation3 + $0x38] sm:$0xff] 0.0
      %47 = vst [vmem:[#allocation3 + $0x40] sm:$0xff] 0.0
      %48 = vst [vmem:[#allocation3 + $0x48] sm:$0xff] 0.0
      %49 = vst [vmem:[#allocation3 + $0x50] sm:$0xff] 0.0
      %50 = vst [vmem:[#allocation3 + $0x58] sm:$0xff] 0.0
      %51 = vst [vmem:[#allocation3 + $0x60] sm:$0xff] 0.0
      %52 = vst [vmem:[#allocation3 + $0x68] sm:$0xff] 0.0
      %53 = vst [vmem:[#allocation3 + $0x70] sm:$0xff] 0.0
      %54 = vst [vmem:[#allocation3 + $0x78] sm:$0xff] 0.0
    $region41: #{tpu_custom_call.1} parent=1 // pred_fallthru
      _
    %v55 = vld [vmem:[%s0] sm:$0xff]
    %v56 = vld [vmem:[%s0 + $0x8] sm:$0xff]
    %v57 = vld [vmem:[%s0 + $0x10] sm:$0xff]
    %v58 = vld [vmem:[%s0 + $0x18] sm:$0xff]
    %v59 = vld [vmem:[%s0 + $0x20] sm:$0xff]
    %v60 = vld [vmem:[%s0 + $0x28] sm:$0xff]
    %v61 = vld [vmem:[%s0 + $0x30] sm:$0xff]
    %v62 = vld [vmem:[%s0 + $0x38] sm:$0xff]
    %v63 = vld [vmem:[%s0 + $0x40] sm:$0xff]
    %v64 = vld [vmem:[%s0 + $0x48] sm:$0xff]
    %v65 = vld [vmem:[%s0 + $0x50] sm:$0xff]
    %v66 = vld [vmem:[%s0 + $0x58] sm:$0xff]
    %v67 = vld [vmem:[%s0 + $0x60] sm:$0xff]
    %v68 = vld [vmem:[%s0 + $0x68] sm:$0xff]
    %v69 = vld [vmem:[%s0 + $0x70] sm:$0xff]
    %v70 = vld [vmem:[%s0 + $0x78] sm:$0xff]
    %v71 = vld [vmem:[%s0 + $0x80] sm:$0xff]
    %v72 = vld [vmem:[%s0 + $0x88] sm:$0xff]
    %v73 = vld [vmem:[%s0 + $0x90] sm:$0xff]
    %v74 = vld [vmem:[%s0 + $0x98] sm:$0xff]
    %v75 = vld [vmem:[%s0 + $0xa0] sm:$0xff]
    %v76 = vld [vmem:[%s0 + $0xa8] sm:$0xff]
    %v77 = vld [vmem:[%s0 + $0xb0] sm:$0xff]
    %v78 = vld [vmem:[%s0 + $0xb8] sm:$0xff]
    %v79 = vld [vmem:[%s0 + $0xc0] sm:$0xff]
    %v80 = vld [vmem:[%s0 + $0xc8] sm:$0xff]
    %v81 = vld [vmem:[%s0 + $0xd0] sm:$0xff]
    %v82 = vld [vmem:[%s0 + $0xd8] sm:$0xff]
    %v83 = vld [vmem:[%s0 + $0xe0] sm:$0xff]
    %v84 = vld [vmem:[%s0 + $0xe8] sm:$0xff]
    %v85 = vld [vmem:[%s0 + $0xf0] sm:$0xff]
    %v86 = vld [vmem:[%s0 + $0xf8] sm:$0xff]
    %v87 = vld [vmem:[%s1] sm:$0x1]
    %89 = vset.pattern.permute.xlu0 0
    %90 = vperm.xlu0 %89, %v55
    %v91 = vpop.permute.xlu0 %90
    %94 = vset.pattern.permute.xlu0 0
    %95 = vperm.xlu0 %94, %v56
    %v96 = vpop.permute.xlu0 %95
    %99 = vset.pattern.permute.xlu0 0
    %100 = vperm.xlu0 %99, %v57
    %v101 = vpop.permute.xlu0 %100
    %104 = vset.pattern.permute.xlu0 0
    %105 = vperm.xlu0 %104, %v58
    %v106 = vpop.permute.xlu0 %105
    %109 = vset.pattern.permute.xlu0 0
    %110 = vperm.xlu0 %109, %v59
    %v111 = vpop.permute.xlu0 %110
    %114 = vset.pattern.permute.xlu0 0
    %115 = vperm.xlu0 %114, %v60
    %v116 = vpop.permute.xlu0 %115
    %119 = vset.pattern.permute.xlu0 0
    %120 = vperm.xlu0 %119, %v61
    %v121 = vpop.permute.xlu0 %120
    %124 = vset.pattern.permute.xlu0 0
    %125 = vperm.xlu0 %124, %v62
    %v126 = vpop.permute.xlu0 %125
    %129 = vset.pattern.permute.xlu0 0
    %130 = vperm.xlu0 %129, %v63
    %v131 = vpop.permute.xlu0 %130
    %134 = vset.pattern.permute.xlu0 0
    %135 = vperm.xlu0 %134, %v64
    %v136 = vpop.permute.xlu0 %135
    %139 = vset.pattern.permute.xlu0 0
    %140 = vperm.xlu0 %139, %v65
    %v141 = vpop.permute.xlu0 %140
    %144 = vset.pattern.permute.xlu0 0
    %145 = vperm.xlu0 %144, %v66
    %v146 = vpop.permute.xlu0 %145
    %149 = vset.pattern.permute.xlu0 0
    %150 = vperm.xlu0 %149, %v67
    %v151 = vpop.permute.xlu0 %150
    %154 = vset.pattern.permute.xlu0 0
    %155 = vperm.xlu0 %154, %v68
    %v156 = vpop.permute.xlu0 %155
    %159 = vset.pattern.permute.xlu0 0
    %160 = vperm.xlu0 %159, %v69
    %v161 = vpop.permute.xlu0 %160
    %164 = vset.pattern.permute.xlu0 0
    %165 = vperm.xlu0 %164, %v70
    %v166 = vpop.permute.xlu0 %165
    %169 = vset.pattern.permute.xlu0 0
    %170 = vperm.xlu0 %169, %v71
    %v171 = vpop.permute.xlu0 %170
    %174 = vset.pattern.permute.xlu0 0
    %175 = vperm.xlu0 %174, %v72
    %v176 = vpop.permute.xlu0 %175
    %179 = vset.pattern.permute.xlu0 0
    %180 = vperm.xlu0 %179, %v73
    %v181 = vpop.permute.xlu0 %180
    %184 = vset.pattern.permute.xlu0 0
    %185 = vperm.xlu0 %184, %v74
    %v186 = vpop.permute.xlu0 %185
    %189 = vset.pattern.permute.xlu0 0
    %190 = vperm.xlu0 %189, %v75
    %v191 = vpop.permute.xlu0 %190
    %194 = vset.pattern.permute.xlu0 0
    %195 = vperm.xlu0 %194, %v76
    %v196 = vpop.permute.xlu0 %195
    %199 = vset.pattern.permute.xlu0 0
    %200 = vperm.xlu0 %199, %v77
    %v201 = vpop.permute.xlu0 %200
    %204 = vset.pattern.permute.xlu0 0
    %205 = vperm.xlu0 %204, %v78
    %v206 = vpop.permute.xlu0 %205
    %209 = vset.pattern.permute.xlu0 0
    %210 = vperm.xlu0 %209, %v79
    %v211 = vpop.permute.xlu0 %210
    %214 = vset.pattern.permute.xlu0 0
    %215 = vperm.xlu0 %214, %v80
    %v216 = vpop.permute.xlu0 %215
    %219 = vset.pattern.permute.xlu0 0
    %220 = vperm.xlu0 %219, %v81
    %v221 = vpop.permute.xlu0 %220
    %224 = vset.pattern.permute.xlu0 0
    %225 = vperm.xlu0 %224, %v82
    %v226 = vpop.permute.xlu0 %225
    %229 = vset.pattern.permute.xlu0 0
    %230 = vperm.xlu0 %229, %v83
    %v231 = vpop.permute.xlu0 %230
    %234 = vset.pattern.permute.xlu0 0
    %235 = vperm.xlu0 %234, %v84
    %v236 = vpop.permute.xlu0 %235
    %239 = vset.pattern.permute.xlu0 0
    %240 = vperm.xlu0 %239, %v85
    %v241 = vpop.permute.xlu0 %240
    %244 = vset.pattern.permute.xlu0 0
    %245 = vperm.xlu0 %244, %v86
    %v246 = vpop.permute.xlu0 %245
    %v249 = vlaneseq
    %v250 = vshrl.u32 %v249, 7
    %v251 = vsub.s32 0, %v250
    %v252 = vrot.slane %v87, %v251
    %v254 = vmul.f32 %v91, %v252
    %v255 = vmul.f32 %v96, %v252
    %v256 = vmul.f32 %v101, %v252
    %v257 = vmul.f32 %v106, %v252
    %v258 = vmul.f32 %v111, %v252
    %v259 = vmul.f32 %v116, %v252
    %v260 = vmul.f32 %v121, %v252
    %v261 = vmul.f32 %v126, %v252
    %v262 = vmul.f32 %v131, %v252
    %v263 = vmul.f32 %v136, %v252
    %v264 = vmul.f32 %v141, %v252
    %v265 = vmul.f32 %v146, %v252
    %v266 = vmul.f32 %v151, %v252
    %v267 = vmul.f32 %v156, %v252
    %v268 = vmul.f32 %v161, %v252
    %v269 = vmul.f32 %v166, %v252
    %v270 = vmul.f32 %v171, %v252
    %v271 = vmul.f32 %v176, %v252
    %v272 = vmul.f32 %v181, %v252
    %v273 = vmul.f32 %v186, %v252
    %v274 = vmul.f32 %v191, %v252
    %v275 = vmul.f32 %v196, %v252
    %v276 = vmul.f32 %v201, %v252
    %v277 = vmul.f32 %v206, %v252
    %v278 = vmul.f32 %v211, %v252
    %v279 = vmul.f32 %v216, %v252
    %v280 = vmul.f32 %v221, %v252
    %v281 = vmul.f32 %v226, %v252
    %v282 = vmul.f32 %v231, %v252
    %v283 = vmul.f32 %v236, %v252
    %v284 = vmul.f32 %v241, %v252
    %v285 = vmul.f32 %v246, %v252
    %v286 = vld [vmem:[%s2] sm:$0x1]
    %v288 = vlaneseq
    %v289 = vshrl.u32 %v288, 7
    %v290 = vsub.s32 0, %v289
    %v291 = vrot.slane %v286, %v290
    %v293 = vadd.f32 %v254, %v291
    %v294 = vadd.f32 %v255, %v291
    %v295 = vadd.f32 %v256, %v291
    %v296 = vadd.f32 %v257, %v291
    %v297 = vadd.f32 %v258, %v291
    %v298 = vadd.f32 %v259, %v291
    %v299 = vadd.f32 %v260, %v291
    %v300 = vadd.f32 %v261, %v291
    %v301 = vadd.f32 %v262, %v291
    %v302 = vadd.f32 %v263, %v291
    %v303 = vadd.f32 %v264, %v291
    %v304 = vadd.f32 %v265, %v291
    %v305 = vadd.f32 %v266, %v291
    %v306 = vadd.f32 %v267, %v291
    %v307 = vadd.f32 %v268, %v291
    %v308 = vadd.f32 %v269, %v291
    %v309 = vadd.f32 %v270, %v291
    %v310 = vadd.f32 %v271, %v291
    %v311 = vadd.f32 %v272, %v291
    %v312 = vadd.f32 %v273, %v291
    %v313 = vadd.f32 %v274, %v291
    %v314 = vadd.f32 %v275, %v291
    %v315 = vadd.f32 %v276, %v291
    %v316 = vadd.f32 %v277, %v291
    %v317 = vadd.f32 %v278, %v291
    %v318 = vadd.f32 %v279, %v291
    %v319 = vadd.f32 %v280, %v291
    %v320 = vadd.f32 %v281, %v291
    %v321 = vadd.f32 %v282, %v291
    %v322 = vadd.f32 %v283, %v291
    %v323 = vadd.f32 %v284, %v291
    %v324 = vadd.f32 %v285, %v291
    %v325 = vmax.f32 %v293, 0.0
    %v326 = vmax.f32 %v294, 0.0
    %v327 = vmax.f32 %v295, 0.0
    %v328 = vmax.f32 %v296, 0.0
    %v329 = vmax.f32 %v297, 0.0
    %v330 = vmax.f32 %v298, 0.0
    %v331 = vmax.f32 %v299, 0.0
    %v332 = vmax.f32 %v300, 0.0
    %v333 = vmax.f32 %v301, 0.0
    %v334 = vmax.f32 %v302, 0.0
    %v335 = vmax.f32 %v303, 0.0
    %v336 = vmax.f32 %v304, 0.0
    %v337 = vmax.f32 %v305, 0.0
    %v338 = vmax.f32 %v306, 0.0
    %v339 = vmax.f32 %v307, 0.0
    %v340 = vmax.f32 %v308, 0.0
    %v341 = vmax.f32 %v309, 0.0
    %v342 = vmax.f32 %v310, 0.0
    %v343 = vmax.f32 %v311, 0.0
    %v344 = vmax.f32 %v312, 0.0
    %v345 = vmax.f32 %v313, 0.0
    %v346 = vmax.f32 %v314, 0.0
    %v347 = vmax.f32 %v315, 0.0
    %v348 = vmax.f32 %v316, 0.0
    %v349 = vmax.f32 %v317, 0.0
    %v350 = vmax.f32 %v318, 0.0
    %v351 = vmax.f32 %v319, 0.0
    %v352 = vmax.f32 %v320, 0.0
    %v353 = vmax.f32 %v321, 0.0
    %v354 = vmax.f32 %v322, 0.0
    %v355 = vmax.f32 %v323, 0.0
    %v356 = vmax.f32 %v324, 0.0
    %v357 = vld [vmem:[%s3] sm:$0x1]
    %v359 = vlaneseq
    %v360 = vshrl.u32 %v359, 7
    %v361 = vsub.s32 0, %v360
    %v362 = vrot.slane %v357, %v361
    %v364 = vmul.f32 %v325, %v362
    %v365 = vmul.f32 %v326, %v362
    %v366 = vmul.f32 %v327, %v362
    %v367 = vmul.f32 %v328, %v362
    %v368 = vmul.f32 %v329, %v362
    %v369 = vmul.f32 %v330, %v362
    %v370 = vmul.f32 %v331, %v362
    %v371 = vmul.f32 %v332, %v362
    %v372 = vmul.f32 %v333, %v362
    %v373 = vmul.f32 %v334, %v362
    %v374 = vmul.f32 %v335, %v362
    %v375 = vmul.f32 %v336, %v362
    %v376 = vmul.f32 %v337, %v362
    %v377 = vmul.f32 %v338, %v362
    %v378 = vmul.f32 %v339, %v362
    %v379 = vmul.f32 %v340, %v362
    %v380 = vmul.f32 %v341, %v362
    %v381 = vmul.f32 %v342, %v362
    %v382 = vmul.f32 %v343, %v362
    %v383 = vmul.f32 %v344, %v362
    %v384 = vmul.f32 %v345, %v362
    %v385 = vmul.f32 %v346, %v362
    %v386 = vmul.f32 %v347, %v362
    %v387 = vmul.f32 %v348, %v362
    %v388 = vmul.f32 %v349, %v362
    %v389 = vmul.f32 %v350, %v362
    %v390 = vmul.f32 %v351, %v362
    %v391 = vmul.f32 %v352, %v362
    %v392 = vmul.f32 %v353, %v362
    %v393 = vmul.f32 %v354, %v362
    %v394 = vmul.f32 %v355, %v362
    %v395 = vmul.f32 %v356, %v362
    %vm396 = vcmask 261120
    %v397 = vsel %vm396, %v364, 0.0
    %398 = vadd.xlane.f32.xlu0 %v397
    %v399 = vpop.xlane.xlu0 %398
    %v400 = vsel %vm396, %v365, 0.0
    %401 = vadd.xlane.f32.xlu0 %v400
    %v402 = vpop.xlane.xlu0 %401
    %v403 = vsel %vm396, %v366, 0.0
    %404 = vadd.xlane.f32.xlu0 %v403
    %v405 = vpop.xlane.xlu0 %404
    %v406 = vsel %vm396, %v367, 0.0
    %407 = vadd.xlane.f32.xlu0 %v406
    %v408 = vpop.xlane.xlu0 %407
    %v409 = vsel %vm396, %v368, 0.0
    %410 = vadd.xlane.f32.xlu0 %v409
    %v411 = vpop.xlane.xlu0 %410
    %v412 = vsel %vm396, %v369, 0.0
    %413 = vadd.xlane.f32.xlu0 %v412
    %v414 = vpop.xlane.xlu0 %413
    %v415 = vsel %vm396, %v370, 0.0
    %416 = vadd.xlane.f32.xlu0 %v415
    %v417 = vpop.xlane.xlu0 %416
    %v418 = vsel %vm396, %v371, 0.0
    %419 = vadd.xlane.f32.xlu0 %v418
    %v420 = vpop.xlane.xlu0 %419
    %v421 = vsel %vm396, %v372, 0.0
    %422 = vadd.xlane.f32.xlu0 %v421
    %v423 = vpop.xlane.xlu0 %422
    %v424 = vsel %vm396, %v373, 0.0
    %425 = vadd.xlane.f32.xlu0 %v424
    %v426 = vpop.xlane.xlu0 %425
    %v427 = vsel %vm396, %v374, 0.0
    %428 = vadd.xlane.f32.xlu0 %v427
    %v429 = vpop.xlane.xlu0 %428
    %v430 = vsel %vm396, %v375, 0.0
    %431 = vadd.xlane.f32.xlu0 %v430
    %v432 = vpop.xlane.xlu0 %431
    %v433 = vsel %vm396, %v376, 0.0
    %434 = vadd.xlane.f32.xlu0 %v433
    %v435 = vpop.xlane.xlu0 %434
    %v436 = vsel %vm396, %v377, 0.0
    %437 = vadd.xlane.f32.xlu0 %v436
    %v438 = vpop.xlane.xlu0 %437
    %v439 = vsel %vm396, %v378, 0.0
    %440 = vadd.xlane.f32.xlu0 %v439
    %v441 = vpop.xlane.xlu0 %440
    %v442 = vsel %vm396, %v379, 0.0
    %443 = vadd.xlane.f32.xlu0 %v442
    %v444 = vpop.xlane.xlu0 %443
    %v445 = vsel %vm396, %v380, 0.0
    %446 = vadd.xlane.f32.xlu0 %v445
    %v447 = vpop.xlane.xlu0 %446
    %v448 = vsel %vm396, %v381, 0.0
    %449 = vadd.xlane.f32.xlu0 %v448
    %v450 = vpop.xlane.xlu0 %449
    %v451 = vsel %vm396, %v382, 0.0
    %452 = vadd.xlane.f32.xlu0 %v451
    %v453 = vpop.xlane.xlu0 %452
    %v454 = vsel %vm396, %v383, 0.0
    %455 = vadd.xlane.f32.xlu0 %v454
    %v456 = vpop.xlane.xlu0 %455
    %v457 = vsel %vm396, %v384, 0.0
    %458 = vadd.xlane.f32.xlu0 %v457
    %v459 = vpop.xlane.xlu0 %458
    %v460 = vsel %vm396, %v385, 0.0
    %461 = vadd.xlane.f32.xlu0 %v460
    %v462 = vpop.xlane.xlu0 %461
    %v463 = vsel %vm396, %v386, 0.0
    %464 = vadd.xlane.f32.xlu0 %v463
    %v465 = vpop.xlane.xlu0 %464
    %v466 = vsel %vm396, %v387, 0.0
    %467 = vadd.xlane.f32.xlu0 %v466
    %v468 = vpop.xlane.xlu0 %467
    %v469 = vsel %vm396, %v388, 0.0
    %470 = vadd.xlane.f32.xlu0 %v469
    %v471 = vpop.xlane.xlu0 %470
    %v472 = vsel %vm396, %v389, 0.0
    %473 = vadd.xlane.f32.xlu0 %v472
    %v474 = vpop.xlane.xlu0 %473
    %v475 = vsel %vm396, %v390, 0.0
    %476 = vadd.xlane.f32.xlu0 %v475
    %v477 = vpop.xlane.xlu0 %476
    %v478 = vsel %vm396, %v391, 0.0
    %479 = vadd.xlane.f32.xlu0 %v478
    %v480 = vpop.xlane.xlu0 %479
    %v481 = vsel %vm396, %v392, 0.0
    %482 = vadd.xlane.f32.xlu0 %v481
    %v483 = vpop.xlane.xlu0 %482
    %v484 = vsel %vm396, %v393, 0.0
    %485 = vadd.xlane.f32.xlu0 %v484
    %v486 = vpop.xlane.xlu0 %485
    %v487 = vsel %vm396, %v394, 0.0
    %488 = vadd.xlane.f32.xlu0 %v487
    %v489 = vpop.xlane.xlu0 %488
    %v490 = vsel %vm396, %v395, 0.0
    %491 = vadd.xlane.f32.xlu0 %v490
    %v492 = vpop.xlane.xlu0 %491
    %v493 = vld [vmem:[#allocation2] sm:$0x1]
    %v495 = vlaneseq
    %v496 = vshrl.u32 %v495, 7
    %v497 = vsub.s32 0, %v496
    %v498 = vrot.slane %v493, %v497
    %v500 = vadd.f32 %v399, %v498
    %v501 = vadd.f32 %v402, %v498
    %v502 = vadd.f32 %v405, %v498
    %v503 = vadd.f32 %v408, %v498
    %v504 = vadd.f32 %v411, %v498
    %v505 = vadd.f32 %v414, %v498
    %v506 = vadd.f32 %v417, %v498
    %v507 = vadd.f32 %v420, %v498
    %v508 = vadd.f32 %v423, %v498
    %v509 = vadd.f32 %v426, %v498
    %v510 = vadd.f32 %v429, %v498
    %v511 = vadd.f32 %v432, %v498
    %v512 = vadd.f32 %v435, %v498
    %v513 = vadd.f32 %v438, %v498
    %v514 = vadd.f32 %v441, %v498
    %v515 = vadd.f32 %v444, %v498
    %v516 = vadd.f32 %v447, %v498
    %v517 = vadd.f32 %v450, %v498
    %v518 = vadd.f32 %v453, %v498
    %v519 = vadd.f32 %v456, %v498
    %v520 = vadd.f32 %v459, %v498
    %v521 = vadd.f32 %v462, %v498
    %v522 = vadd.f32 %v465, %v498
    %v523 = vadd.f32 %v468, %v498
    %v524 = vadd.f32 %v471, %v498
    %v525 = vadd.f32 %v474, %v498
    %v526 = vadd.f32 %v477, %v498
    %v527 = vadd.f32 %v480, %v498
    %v528 = vadd.f32 %v483, %v498
    %v529 = vadd.f32 %v486, %v498
    %v530 = vadd.f32 %v489, %v498
    %v531 = vadd.f32 %v492, %v498
    %v532 = vxor.u32 %v500, 2147483648
    %v533 = vxor.u32 %v501, 2147483648
    %v534 = vxor.u32 %v502, 2147483648
    %v535 = vxor.u32 %v503, 2147483648
    %v536 = vxor.u32 %v504, 2147483648
    %v537 = vxor.u32 %v505, 2147483648
    %v538 = vxor.u32 %v506, 2147483648
    %v539 = vxor.u32 %v507, 2147483648
    %v540 = vxor.u32 %v508, 2147483648
    %v541 = vxor.u32 %v509, 2147483648
    %v542 = vxor.u32 %v510, 2147483648
    %v543 = vxor.u32 %v511, 2147483648
    %v544 = vxor.u32 %v512, 2147483648
    %v545 = vxor.u32 %v513, 2147483648
    %v546 = vxor.u32 %v514, 2147483648
    %v547 = vxor.u32 %v515, 2147483648
    %v548 = vxor.u32 %v516, 2147483648
    %v549 = vxor.u32 %v517, 2147483648
    %v550 = vxor.u32 %v518, 2147483648
    %v551 = vxor.u32 %v519, 2147483648
    %v552 = vxor.u32 %v520, 2147483648
    %v553 = vxor.u32 %v521, 2147483648
    %v554 = vxor.u32 %v522, 2147483648
    %v555 = vxor.u32 %v523, 2147483648
    %v556 = vxor.u32 %v524, 2147483648
    %v557 = vxor.u32 %v525, 2147483648
    %v558 = vxor.u32 %v526, 2147483648
    %v559 = vxor.u32 %v527, 2147483648
    %v560 = vxor.u32 %v528, 2147483648
    %v561 = vxor.u32 %v529, 2147483648
    %v562 = vxor.u32 %v530, 2147483648
    %v563 = vxor.u32 %v531, 2147483648
    %v564 = vmul.f32 %v532, 1.442695
    %v565 = vpow.pop %v564
    %v566 = vmul.f32 %v533, 1.442695
    %v567 = vpow.pop %v566
    %v568 = vmul.f32 %v534, 1.442695
    %v569 = vpow.pop %v568
    %v570 = vmul.f32 %v535, 1.442695
    %v571 = vpow.pop %v570
    %v572 = vmul.f32 %v536, 1.442695
    %v573 = vpow.pop %v572
    %v574 = vmul.f32 %v537, 1.442695
    %v575 = vpow.pop %v574
    %v576 = vmul.f32 %v538, 1.442695
    %v577 = vpow.pop %v576
    %v578 = vmul.f32 %v539, 1.442695
    %v579 = vpow.pop %v578
    %v580 = vmul.f32 %v540, 1.442695
    %v581 = vpow.pop %v580
    %v582 = vmul.f32 %v541, 1.442695
    %v583 = vpow.pop %v582
    %v584 = vmul.f32 %v542, 1.442695
    %v585 = vpow.pop %v584
    %v586 = vmul.f32 %v543, 1.442695
    %v587 = vpow.pop %v586
    %v588 = vmul.f32 %v544, 1.442695
    %v589 = vpow.pop %v588
    %v590 = vmul.f32 %v545, 1.442695
    %v591 = vpow.pop %v590
    %v592 = vmul.f32 %v546, 1.442695
    %v593 = vpow.pop %v592
    %v594 = vmul.f32 %v547, 1.442695
    %v595 = vpow.pop %v594
    %v596 = vmul.f32 %v548, 1.442695
    %v597 = vpow.pop %v596
    %v598 = vmul.f32 %v549, 1.442695
    %v599 = vpow.pop %v598
    %v600 = vmul.f32 %v550, 1.442695
    %v601 = vpow.pop %v600
    %v602 = vmul.f32 %v551, 1.442695
    %v603 = vpow.pop %v602
    %v604 = vmul.f32 %v552, 1.442695
    %v605 = vpow.pop %v604
    %v606 = vmul.f32 %v553, 1.442695
    %v607 = vpow.pop %v606
    %v608 = vmul.f32 %v554, 1.442695
    %v609 = vpow.pop %v608
    %v610 = vmul.f32 %v555, 1.442695
    %v611 = vpow.pop %v610
    %v612 = vmul.f32 %v556, 1.442695
    %v613 = vpow.pop %v612
    %v614 = vmul.f32 %v557, 1.442695
    %v615 = vpow.pop %v614
    %v616 = vmul.f32 %v558, 1.442695
    %v617 = vpow.pop %v616
    %v618 = vmul.f32 %v559, 1.442695
    %v619 = vpow.pop %v618
    %v620 = vmul.f32 %v560, 1.442695
    %v621 = vpow.pop %v620
    %v622 = vmul.f32 %v561, 1.442695
    %v623 = vpow.pop %v622
    %v624 = vmul.f32 %v562, 1.442695
    %v625 = vpow.pop %v624
    %v626 = vmul.f32 %v563, 1.442695
    %v627 = vpow.pop %v626
    %v628 = vadd.f32 %v565, 1.0
    %v629 = vadd.f32 %v567, 1.0
    %v630 = vadd.f32 %v569, 1.0
    %v631 = vadd.f32 %v571, 1.0
    %v632 = vadd.f32 %v573, 1.0
    %v633 = vadd.f32 %v575, 1.0
    %v634 = vadd.f32 %v577, 1.0
    %v635 = vadd.f32 %v579, 1.0
    %v636 = vadd.f32 %v581, 1.0
    %v637 = vadd.f32 %v583, 1.0
    %v638 = vadd.f32 %v585, 1.0
    %v639 = vadd.f32 %v587, 1.0
    %v640 = vadd.f32 %v589, 1.0
    %v641 = vadd.f32 %v591, 1.0
    %v642 = vadd.f32 %v593, 1.0
    %v643 = vadd.f32 %v595, 1.0
    %v644 = vadd.f32 %v597, 1.0
    %v645 = vadd.f32 %v599, 1.0
    %v646 = vadd.f32 %v601, 1.0
    %v647 = vadd.f32 %v603, 1.0
    %v648 = vadd.f32 %v605, 1.0
    %v649 = vadd.f32 %v607, 1.0
    %v650 = vadd.f32 %v609, 1.0
    %v651 = vadd.f32 %v611, 1.0
    %v652 = vadd.f32 %v613, 1.0
    %v653 = vadd.f32 %v615, 1.0
    %v654 = vadd.f32 %v617, 1.0
    %v655 = vadd.f32 %v619, 1.0
    %v656 = vadd.f32 %v621, 1.0
    %v657 = vadd.f32 %v623, 1.0
    %v658 = vadd.f32 %v625, 1.0
    %v659 = vadd.f32 %v627, 1.0
    %v660 = vrcp.pop %v628
    %v661 = vmul.f32 1.0, %v660
    %v662 = vrcp.pop %v629
    %v663 = vmul.f32 1.0, %v662
    %v664 = vrcp.pop %v630
    %v665 = vmul.f32 1.0, %v664
    %v666 = vrcp.pop %v631
    %v667 = vmul.f32 1.0, %v666
    %v668 = vrcp.pop %v632
    %v669 = vmul.f32 1.0, %v668
    %v670 = vrcp.pop %v633
    %v671 = vmul.f32 1.0, %v670
    %v672 = vrcp.pop %v634
    %v673 = vmul.f32 1.0, %v672
    %v674 = vrcp.pop %v635
    %v675 = vmul.f32 1.0, %v674
    %v676 = vrcp.pop %v636
    %v677 = vmul.f32 1.0, %v676
    %v678 = vrcp.pop %v637
    %v679 = vmul.f32 1.0, %v678
    %v680 = vrcp.pop %v638
    %v681 = vmul.f32 1.0, %v680
    %v682 = vrcp.pop %v639
    %v683 = vmul.f32 1.0, %v682
    %v684 = vrcp.pop %v640
    %v685 = vmul.f32 1.0, %v684
    %v686 = vrcp.pop %v641
    %v687 = vmul.f32 1.0, %v686
    %v688 = vrcp.pop %v642
    %v689 = vmul.f32 1.0, %v688
    %v690 = vrcp.pop %v643
    %v691 = vmul.f32 1.0, %v690
    %v692 = vrcp.pop %v644
    %v693 = vmul.f32 1.0, %v692
    %v694 = vrcp.pop %v645
    %v695 = vmul.f32 1.0, %v694
    %v696 = vrcp.pop %v646
    %v697 = vmul.f32 1.0, %v696
    %v698 = vrcp.pop %v647
    %v699 = vmul.f32 1.0, %v698
    %v700 = vrcp.pop %v648
    %v701 = vmul.f32 1.0, %v700
    %v702 = vrcp.pop %v649
    %v703 = vmul.f32 1.0, %v702
    %v704 = vrcp.pop %v650
    %v705 = vmul.f32 1.0, %v704
    %v706 = vrcp.pop %v651
    %v707 = vmul.f32 1.0, %v706
    %v708 = vrcp.pop %v652
    %v709 = vmul.f32 1.0, %v708
    %v710 = vrcp.pop %v653
    %v711 = vmul.f32 1.0, %v710
    %v712 = vrcp.pop %v654
    %v713 = vmul.f32 1.0, %v712
    %v714 = vrcp.pop %v655
    %v715 = vmul.f32 1.0, %v714
    %v716 = vrcp.pop %v656
    %v717 = vmul.f32 1.0, %v716
    %v718 = vrcp.pop %v657
    %v719 = vmul.f32 1.0, %v718
    %v720 = vrcp.pop %v658
    %v721 = vmul.f32 1.0, %v720
    %v722 = vrcp.pop %v659
    %v723 = vmul.f32 1.0, %v722
    %v724 = vlaneseq
    %v725 = vand.u32 %v724, 127
    %s726 = smul.u32 0, 128
    %v727 = vstv %s726
    %v728 = vadd.s32 %v725, %v727
    %v729 = vld [vmem:[%s5] sm:$0xff]
    %v730 = vld [vmem:[%s5 + $0x8] sm:$0xff]
    %v731 = vld [vmem:[%s5 + $0x10] sm:$0xff]
    %v732 = vld [vmem:[%s5 + $0x18] sm:$0xff]
    %v733 = vld [vmem:[%s5 + $0x20] sm:$0xff]
    %v734 = vld [vmem:[%s5 + $0x28] sm:$0xff]
    %v735 = vld [vmem:[%s5 + $0x30] sm:$0xff]
    %v736 = vld [vmem:[%s5 + $0x38] sm:$0xff]
    %v737 = vld [vmem:[%s5 + $0x40] sm:$0xff]
    %v738 = vld [vmem:[%s5 + $0x48] sm:$0xff]
    %v739 = vld [vmem:[%s5 + $0x50] sm:$0xff]
    %v740 = vld [vmem:[%s5 + $0x58] sm:$0xff]
    %v741 = vld [vmem:[%s5 + $0x60] sm:$0xff]
    %v742 = vld [vmem:[%s5 + $0x68] sm:$0xff]
    %v743 = vld [vmem:[%s5 + $0x70] sm:$0xff]
    %v744 = vld [vmem:[%s5 + $0x78] sm:$0xff]
    %v745 = vld [vmem:[%s5 + $0x80] sm:$0xff]
    %v746 = vld [vmem:[%s5 + $0x88] sm:$0xff]
    %v747 = vld [vmem:[%s5 + $0x90] sm:$0xff]
    %v748 = vld [vmem:[%s5 + $0x98] sm:$0xff]
    %v749 = vld [vmem:[%s5 + $0xa0] sm:$0xff]
    %v750 = vld [vmem:[%s5 + $0xa8] sm:$0xff]
    %v751 = vld [vmem:[%s5 + $0xb0] sm:$0xff]
    %v752 = vld [vmem:[%s5 + $0xb8] sm:$0xff]
    %v753 = vld [vmem:[%s5 + $0xc0] sm:$0xff]
    %v754 = vld [vmem:[%s5 + $0xc8] sm:$0xff]
    %v755 = vld [vmem:[%s5 + $0xd0] sm:$0xff]
    %v756 = vld [vmem:[%s5 + $0xd8] sm:$0xff]
    %v757 = vld [vmem:[%s5 + $0xe0] sm:$0xff]
    %v758 = vld [vmem:[%s5 + $0xe8] sm:$0xff]
    %v759 = vld [vmem:[%s5 + $0xf0] sm:$0xff]
    %v760 = vld [vmem:[%s5 + $0xf8] sm:$0xff]
    %761 = vset.pattern.permute.xlu0 0
    %762 = vperm.xlu0 %761, %v729
    %v763 = vpop.permute.xlu0 %762
    %764 = vset.pattern.permute.xlu0 0
    %765 = vperm.xlu0 %764, %v730
    %v766 = vpop.permute.xlu0 %765
    %767 = vset.pattern.permute.xlu0 0
    %768 = vperm.xlu0 %767, %v731
    %v769 = vpop.permute.xlu0 %768
    %770 = vset.pattern.permute.xlu0 0
    %771 = vperm.xlu0 %770, %v732
    %v772 = vpop.permute.xlu0 %771
    %773 = vset.pattern.permute.xlu0 0
    %774 = vperm.xlu0 %773, %v733
    %v775 = vpop.permute.xlu0 %774
    %776 = vset.pattern.permute.xlu0 0
    %777 = vperm.xlu0 %776, %v734
    %v778 = vpop.permute.xlu0 %777
    %779 = vset.pattern.permute.xlu0 0
    %780 = vperm.xlu0 %779, %v735
    %v781 = vpop.permute.xlu0 %780
    %782 = vset.pattern.permute.xlu0 0
    %783 = vperm.xlu0 %782, %v736
    %v784 = vpop.permute.xlu0 %783
    %785 = vset.pattern.permute.xlu0 0
    %786 = vperm.xlu0 %785, %v737
    %v787 = vpop.permute.xlu0 %786
    %788 = vset.pattern.permute.xlu0 0
    %789 = vperm.xlu0 %788, %v738
    %v790 = vpop.permute.xlu0 %789
    %791 = vset.pattern.permute.xlu0 0
    %792 = vperm.xlu0 %791, %v739
    %v793 = vpop.permute.xlu0 %792
    %794 = vset.pattern.permute.xlu0 0
    %795 = vperm.xlu0 %794, %v740
    %v796 = vpop.permute.xlu0 %795
    %797 = vset.pattern.permute.xlu0 0
    %798 = vperm.xlu0 %797, %v741
    %v799 = vpop.permute.xlu0 %798
    %800 = vset.pattern.permute.xlu0 0
    %801 = vperm.xlu0 %800, %v742
    %v802 = vpop.permute.xlu0 %801
    %803 = vset.pattern.permute.xlu0 0
    %804 = vperm.xlu0 %803, %v743
    %v805 = vpop.permute.xlu0 %804
    %806 = vset.pattern.permute.xlu0 0
    %807 = vperm.xlu0 %806, %v744
    %v808 = vpop.permute.xlu0 %807
    %809 = vset.pattern.permute.xlu0 0
    %810 = vperm.xlu0 %809, %v745
    %v811 = vpop.permute.xlu0 %810
    %812 = vset.pattern.permute.xlu0 0
    %813 = vperm.xlu0 %812, %v746
    %v814 = vpop.permute.xlu0 %813
    %815 = vset.pattern.permute.xlu0 0
    %816 = vperm.xlu0 %815, %v747
    %v817 = vpop.permute.xlu0 %816
    %818 = vset.pattern.permute.xlu0 0
    %819 = vperm.xlu0 %818, %v748
    %v820 = vpop.permute.xlu0 %819
    %821 = vset.pattern.permute.xlu0 0
    %822 = vperm.xlu0 %821, %v749
    %v823 = vpop.permute.xlu0 %822
    %824 = vset.pattern.permute.xlu0 0
    %825 = vperm.xlu0 %824, %v750
    %v826 = vpop.permute.xlu0 %825
    %827 = vset.pattern.permute.xlu0 0
    %828 = vperm.xlu0 %827, %v751
    %v829 = vpop.permute.xlu0 %828
    %830 = vset.pattern.permute.xlu0 0
    %831 = vperm.xlu0 %830, %v752
    %v832 = vpop.permute.xlu0 %831
    %833 = vset.pattern.permute.xlu0 0
    %834 = vperm.xlu0 %833, %v753
    %v835 = vpop.permute.xlu0 %834
    %836 = vset.pattern.permute.xlu0 0
    %837 = vperm.xlu0 %836, %v754
    %v838 = vpop.permute.xlu0 %837
    %839 = vset.pattern.permute.xlu0 0
    %840 = vperm.xlu0 %839, %v755
    %v841 = vpop.permute.xlu0 %840
    %842 = vset.pattern.permute.xlu0 0
    %843 = vperm.xlu0 %842, %v756
    %v844 = vpop.permute.xlu0 %843
    %845 = vset.pattern.permute.xlu0 0
    %846 = vperm.xlu0 %845, %v757
    %v847 = vpop.permute.xlu0 %846
    %848 = vset.pattern.permute.xlu0 0
    %849 = vperm.xlu0 %848, %v758
    %v850 = vpop.permute.xlu0 %849
    %851 = vset.pattern.permute.xlu0 0
    %852 = vperm.xlu0 %851, %v759
    %v853 = vpop.permute.xlu0 %852
    %854 = vset.pattern.permute.xlu0 0
    %855 = vperm.xlu0 %854, %v760
    %v856 = vpop.permute.xlu0 %855
    %vm857 = vcmp.eq.s32.totalorder %v728, %v763
    %vm858 = vcmp.eq.s32.totalorder %v728, %v766
    %vm859 = vcmp.eq.s32.totalorder %v728, %v769
    %vm860 = vcmp.eq.s32.totalorder %v728, %v772
    %vm861 = vcmp.eq.s32.totalorder %v728, %v775
    %vm862 = vcmp.eq.s32.totalorder %v728, %v778
    %vm863 = vcmp.eq.s32.totalorder %v728, %v781
    %vm864 = vcmp.eq.s32.totalorder %v728, %v784
    %vm865 = vcmp.eq.s32.totalorder %v728, %v787
    %vm866 = vcmp.eq.s32.totalorder %v728, %v790
    %vm867 = vcmp.eq.s32.totalorder %v728, %v793
    %vm868 = vcmp.eq.s32.totalorder %v728, %v796
    %vm869 = vcmp.eq.s32.totalorder %v728, %v799
    %vm870 = vcmp.eq.s32.totalorder %v728, %v802
    %vm871 = vcmp.eq.s32.totalorder %v728, %v805
    %vm872 = vcmp.eq.s32.totalorder %v728, %v808
    %vm873 = vcmp.eq.s32.totalorder %v728, %v811
    %vm874 = vcmp.eq.s32.totalorder %v728, %v814
    %vm875 = vcmp.eq.s32.totalorder %v728, %v817
    %vm876 = vcmp.eq.s32.totalorder %v728, %v820
    %vm877 = vcmp.eq.s32.totalorder %v728, %v823
    %vm878 = vcmp.eq.s32.totalorder %v728, %v826
    %vm879 = vcmp.eq.s32.totalorder %v728, %v829
    %vm880 = vcmp.eq.s32.totalorder %v728, %v832
    %vm881 = vcmp.eq.s32.totalorder %v728, %v835
    %vm882 = vcmp.eq.s32.totalorder %v728, %v838
    %vm883 = vcmp.eq.s32.totalorder %v728, %v841
    %vm884 = vcmp.eq.s32.totalorder %v728, %v844
    %vm885 = vcmp.eq.s32.totalorder %v728, %v847
    %vm886 = vcmp.eq.s32.totalorder %v728, %v850
    %vm887 = vcmp.eq.s32.totalorder %v728, %v853
    %vm888 = vcmp.eq.s32.totalorder %v728, %v856
    %890 = vset.pattern.permute.xlu0 0
    %891 = vperm.xlu0 %890, %v661
    %v892 = vpop.permute.xlu0 %891
    %895 = vset.pattern.permute.xlu0 0
    %896 = vperm.xlu0 %895, %v663
    %v897 = vpop.permute.xlu0 %896
    %900 = vset.pattern.permute.xlu0 0
    %901 = vperm.xlu0 %900, %v665
    %v902 = vpop.permute.xlu0 %901
    %905 = vset.pattern.permute.xlu0 0
    %906 = vperm.xlu0 %905, %v667
    %v907 = vpop.permute.xlu0 %906
    %910 = vset.pattern.permute.xlu0 0
    %911 = vperm.xlu0 %910, %v669
    %v912 = vpop.permute.xlu0 %911
    %915 = vset.pattern.permute.xlu0 0
    %916 = vperm.xlu0 %915, %v671
    %v917 = vpop.permute.xlu0 %916
    %920 = vset.pattern.permute.xlu0 0
    %921 = vperm.xlu0 %920, %v673
    %v922 = vpop.permute.xlu0 %921
    %925 = vset.pattern.permute.xlu0 0
    %926 = vperm.xlu0 %925, %v675
    %v927 = vpop.permute.xlu0 %926
    %930 = vset.pattern.permute.xlu0 0
    %931 = vperm.xlu0 %930, %v677
    %v932 = vpop.permute.xlu0 %931
    %935 = vset.pattern.permute.xlu0 0
    %936 = vperm.xlu0 %935, %v679
    %v937 = vpop.permute.xlu0 %936
    %940 = vset.pattern.permute.xlu0 0
    %941 = vperm.xlu0 %940, %v681
    %v942 = vpop.permute.xlu0 %941
    %945 = vset.pattern.permute.xlu0 0
    %946 = vperm.xlu0 %945, %v683
    %v947 = vpop.permute.xlu0 %946
    %950 = vset.pattern.permute.xlu0 0
    %951 = vperm.xlu0 %950, %v685
    %v952 = vpop.permute.xlu0 %951
    %955 = vset.pattern.permute.xlu0 0
    %956 = vperm.xlu0 %955, %v687
    %v957 = vpop.permute.xlu0 %956
    %960 = vset.pattern.permute.xlu0 0
    %961 = vperm.xlu0 %960, %v689
    %v962 = vpop.permute.xlu0 %961
    %965 = vset.pattern.permute.xlu0 0
    %966 = vperm.xlu0 %965, %v691
    %v967 = vpop.permute.xlu0 %966
    %970 = vset.pattern.permute.xlu0 0
    %971 = vperm.xlu0 %970, %v693
    %v972 = vpop.permute.xlu0 %971
    %975 = vset.pattern.permute.xlu0 0
    %976 = vperm.xlu0 %975, %v695
    %v977 = vpop.permute.xlu0 %976
    %980 = vset.pattern.permute.xlu0 0
    %981 = vperm.xlu0 %980, %v697
    %v982 = vpop.permute.xlu0 %981
    %985 = vset.pattern.permute.xlu0 0
    %986 = vperm.xlu0 %985, %v699
    %v987 = vpop.permute.xlu0 %986
    %990 = vset.pattern.permute.xlu0 0
    %991 = vperm.xlu0 %990, %v701
    %v992 = vpop.permute.xlu0 %991
    %995 = vset.pattern.permute.xlu0 0
    %996 = vperm.xlu0 %995, %v703
    %v997 = vpop.permute.xlu0 %996
    %1000 = vset.pattern.permute.xlu0 0
    %1001 = vperm.xlu0 %1000, %v705
    %v1002 = vpop.permute.xlu0 %1001
    %1005 = vset.pattern.permute.xlu0 0
    %1006 = vperm.xlu0 %1005, %v707
    %v1007 = vpop.permute.xlu0 %1006
    %1010 = vset.pattern.permute.xlu0 0
    %1011 = vperm.xlu0 %1010, %v709
    %v1012 = vpop.permute.xlu0 %1011
    %1015 = vset.pattern.permute.xlu0 0
    %1016 = vperm.xlu0 %1015, %v711
    %v1017 = vpop.permute.xlu0 %1016
    %1020 = vset.pattern.permute.xlu0 0
    %1021 = vperm.xlu0 %1020, %v713
    %v1022 = vpop.permute.xlu0 %1021
    %1025 = vset.pattern.permute.xlu0 0
    %1026 = vperm.xlu0 %1025, %v715
    %v1027 = vpop.permute.xlu0 %1026
    %1030 = vset.pattern.permute.xlu0 0
    %1031 = vperm.xlu0 %1030, %v717
    %v1032 = vpop.permute.xlu0 %1031
    %1035 = vset.pattern.permute.xlu0 0
    %1036 = vperm.xlu0 %1035, %v719
    %v1037 = vpop.permute.xlu0 %1036
    %1040 = vset.pattern.permute.xlu0 0
    %1041 = vperm.xlu0 %1040, %v721
    %v1042 = vpop.permute.xlu0 %1041
    %1045 = vset.pattern.permute.xlu0 0
    %1046 = vperm.xlu0 %1045, %v723
    %v1047 = vpop.permute.xlu0 %1046
    %v1049 = vsel %vm857, %v892, 0.0
    %v1050 = vsel %vm858, %v897, 0.0
    %v1051 = vsel %vm859, %v902, 0.0
    %v1052 = vsel %vm860, %v907, 0.0
    %v1053 = vsel %vm861, %v912, 0.0
    %v1054 = vsel %vm862, %v917, 0.0
    %v1055 = vsel %vm863, %v922, 0.0
    %v1056 = vsel %vm864, %v927, 0.0
    %v1057 = vsel %vm865, %v932, 0.0
    %v1058 = vsel %vm866, %v937, 0.0
    %v1059 = vsel %vm867, %v942, 0.0
    %v1060 = vsel %vm868, %v947, 0.0
    %v1061 = vsel %vm869, %v952, 0.0
    %v1062 = vsel %vm870, %v957, 0.0
    %v1063 = vsel %vm871, %v962, 0.0
    %v1064 = vsel %vm872, %v967, 0.0
    %v1065 = vsel %vm873, %v972, 0.0
    %v1066 = vsel %vm874, %v977, 0.0
    %v1067 = vsel %vm875, %v982, 0.0
    %v1068 = vsel %vm876, %v987, 0.0
    %v1069 = vsel %vm877, %v992, 0.0
    %v1070 = vsel %vm878, %v997, 0.0
    %v1071 = vsel %vm879, %v1002, 0.0
    %v1072 = vsel %vm880, %v1007, 0.0
    %v1073 = vsel %vm881, %v1012, 0.0
    %v1074 = vsel %vm882, %v1017, 0.0
    %v1075 = vsel %vm883, %v1022, 0.0
    %v1076 = vsel %vm884, %v1027, 0.0
    %v1077 = vsel %vm885, %v1032, 0.0
    %v1078 = vsel %vm886, %v1037, 0.0
    %v1079 = vsel %vm887, %v1042, 0.0
    %v1080 = vsel %vm888, %v1047, 0.0
    %v1081 = vlaneseq
    %v1082 = vshrl.u32 %v1081, 7
    %v1083 = vadd.s32 %v1082, 8
    %v1084 = vadd.s32 %v1082, 16
    %v1085 = vadd.s32 %v1082, 24
    %v1086 = vadd.s32 %v1082, 32
    %v1087 = vadd.s32 %v1082, 40
    %v1088 = vadd.s32 %v1082, 48
    %v1089 = vadd.s32 %v1082, 56
    %v1090 = vadd.s32 %v1082, 64
    %v1091 = vadd.s32 %v1082, 72
    %v1092 = vadd.s32 %v1082, 80
    %v1093 = vadd.s32 %v1082, 88
    %v1094 = vadd.s32 %v1082, 96
    %v1095 = vadd.s32 %v1082, 104
    %v1096 = vadd.s32 %v1082, 112
    %v1097 = vadd.s32 %v1082, 120
    %v1098 = vld [vmem:[%s6] sm:$0x3]
    %v1099 = vlaneseq
    %v1100 = vshrl.u32 %v1099, 7
    %v1101 = vsub.s32 0, %v1100
    %v1102 = vrot.slane %v1098, %v1101
    %v1103 = vlaneseq
    %v1104 = vshrl.u32 %v1103, 7
    %v1105 = vsub.s32 1, %v1104
    %v1106 = vrot.slane %v1098, %v1105
    %vm1107 = vcmp.eq.s32.totalorder %v1082, %v1102
    %vm1108 = vcmp.eq.s32.totalorder %v1082, %v1106
    %vm1109 = vcmp.eq.s32.totalorder %v1083, %v1102
    %vm1110 = vcmp.eq.s32.totalorder %v1083, %v1106
    %vm1111 = vcmp.eq.s32.totalorder %v1084, %v1102
    %vm1112 = vcmp.eq.s32.totalorder %v1084, %v1106
    %vm1113 = vcmp.eq.s32.totalorder %v1085, %v1102
    %vm1114 = vcmp.eq.s32.totalorder %v1085, %v1106
    %vm1115 = vcmp.eq.s32.totalorder %v1086, %v1102
    %vm1116 = vcmp.eq.s32.totalorder %v1086, %v1106
    %vm1117 = vcmp.eq.s32.totalorder %v1087, %v1102
    %vm1118 = vcmp.eq.s32.totalorder %v1087, %v1106
    %vm1119 = vcmp.eq.s32.totalorder %v1088, %v1102
    %vm1120 = vcmp.eq.s32.totalorder %v1088, %v1106
    %vm1121 = vcmp.eq.s32.totalorder %v1089, %v1102
    %vm1122 = vcmp.eq.s32.totalorder %v1089, %v1106
    %vm1123 = vcmp.eq.s32.totalorder %v1090, %v1102
    %vm1124 = vcmp.eq.s32.totalorder %v1090, %v1106
    %vm1125 = vcmp.eq.s32.totalorder %v1091, %v1102
    %vm1126 = vcmp.eq.s32.totalorder %v1091, %v1106
    %vm1127 = vcmp.eq.s32.totalorder %v1092, %v1102
    %vm1128 = vcmp.eq.s32.totalorder %v1092, %v1106
    %vm1129 = vcmp.eq.s32.totalorder %v1093, %v1102
    %vm1130 = vcmp.eq.s32.totalorder %v1093, %v1106
    %vm1131 = vcmp.eq.s32.totalorder %v1094, %v1102
    %vm1132 = vcmp.eq.s32.totalorder %v1094, %v1106
    %vm1133 = vcmp.eq.s32.totalorder %v1095, %v1102
    %vm1134 = vcmp.eq.s32.totalorder %v1095, %v1106
    %vm1135 = vcmp.eq.s32.totalorder %v1096, %v1102
    %vm1136 = vcmp.eq.s32.totalorder %v1096, %v1106
    %vm1137 = vcmp.eq.s32.totalorder %v1097, %v1102
    %vm1138 = vcmp.eq.s32.totalorder %v1097, %v1106
    %v1139 = vsel %vm1107, 1, 0
    %v1140 = vsel %vm1108, 1, 0
    %v1141 = vsel %vm1109, 1, 0
    %v1142 = vsel %vm1110, 1, 0
    %v1143 = vsel %vm1111, 1, 0
    %v1144 = vsel %vm1112, 1, 0
    %v1145 = vsel %vm1113, 1, 0
    %v1146 = vsel %vm1114, 1, 0
    %v1147 = vsel %vm1115, 1, 0
    %v1148 = vsel %vm1116, 1, 0
    %v1149 = vsel %vm1117, 1, 0
    %v1150 = vsel %vm1118, 1, 0
    %v1151 = vsel %vm1119, 1, 0
    %v1152 = vsel %vm1120, 1, 0
    %v1153 = vsel %vm1121, 1, 0
    %v1154 = vsel %vm1122, 1, 0
    %v1155 = vsel %vm1123, 1, 0
    %v1156 = vsel %vm1124, 1, 0
    %v1157 = vsel %vm1125, 1, 0
    %v1158 = vsel %vm1126, 1, 0
    %v1159 = vsel %vm1127, 1, 0
    %v1160 = vsel %vm1128, 1, 0
    %v1161 = vsel %vm1129, 1, 0
    %v1162 = vsel %vm1130, 1, 0
    %v1163 = vsel %vm1131, 1, 0
    %v1164 = vsel %vm1132, 1, 0
    %v1165 = vsel %vm1133, 1, 0
    %v1166 = vsel %vm1134, 1, 0
    %v1167 = vsel %vm1135, 1, 0
    %v1168 = vsel %vm1136, 1, 0
    %v1169 = vsel %vm1137, 1, 0
    %v1170 = vsel %vm1138, 1, 0
    %v1171 = vcvt.s32.f32 %v1139
    %v1172 = vcvt.s32.f32 %v1140
    %v1173 = vcvt.s32.f32 %v1141
    %v1174 = vcvt.s32.f32 %v1142
    %v1175 = vcvt.s32.f32 %v1143
    %v1176 = vcvt.s32.f32 %v1144
    %v1177 = vcvt.s32.f32 %v1145
    %v1178 = vcvt.s32.f32 %v1146
    %v1179 = vcvt.s32.f32 %v1147
    %v1180 = vcvt.s32.f32 %v1148
    %v1181 = vcvt.s32.f32 %v1149
    %v1182 = vcvt.s32.f32 %v1150
    %v1183 = vcvt.s32.f32 %v1151
    %v1184 = vcvt.s32.f32 %v1152
    %v1185 = vcvt.s32.f32 %v1153
    %v1186 = vcvt.s32.f32 %v1154
    %v1187 = vcvt.s32.f32 %v1155
    %v1188 = vcvt.s32.f32 %v1156
    %v1189 = vcvt.s32.f32 %v1157
    %v1190 = vcvt.s32.f32 %v1158
    %v1191 = vcvt.s32.f32 %v1159
    %v1192 = vcvt.s32.f32 %v1160
    %v1193 = vcvt.s32.f32 %v1161
    %v1194 = vcvt.s32.f32 %v1162
    %v1195 = vcvt.s32.f32 %v1163
    %v1196 = vcvt.s32.f32 %v1164
    %v1197 = vcvt.s32.f32 %v1165
    %v1198 = vcvt.s32.f32 %v1166
    %v1199 = vcvt.s32.f32 %v1167
    %v1200 = vcvt.s32.f32 %v1168
    %v1201 = vcvt.s32.f32 %v1169
    %v1202 = vcvt.s32.f32 %v1170
    %v1203 = vld [vmem:[#allocation3] sm:$0xff]
    %v1204 = vld [vmem:[#allocation3 + $0x8] sm:$0xff]
    %v1205 = vld [vmem:[#allocation3 + $0x10] sm:$0xff]
    %v1206 = vld [vmem:[#allocation3 + $0x18] sm:$0xff]
    %v1207 = vld [vmem:[#allocation3 + $0x20] sm:$0xff]
    %v1208 = vld [vmem:[#allocation3 + $0x28] sm:$0xff]
    %v1209 = vld [vmem:[#allocation3 + $0x30] sm:$0xff]
    %v1210 = vld [vmem:[#allocation3 + $0x38] sm:$0xff]
    %v1211 = vld [vmem:[#allocation3 + $0x40] sm:$0xff]
    %v1212 = vld [vmem:[#allocation3 + $0x48] sm:$0xff]
    %v1213 = vld [vmem:[#allocation3 + $0x50] sm:$0xff]
    %v1214 = vld [vmem:[#allocation3 + $0x58] sm:$0xff]
    %v1215 = vld [vmem:[#allocation3 + $0x60] sm:$0xff]
    %v1216 = vld [vmem:[#allocation3 + $0x68] sm:$0xff]
    %v1217 = vld [vmem:[#allocation3 + $0x70] sm:$0xff]
    %v1218 = vld [vmem:[#allocation3 + $0x78] sm:$0xff]
    %1219 = vmatprep.subr.mxu0 0.0
    %1220 = vmatpush1.msra.mxu0 %v1049
    %1221 = vmatprep.subr.mxu0 0.0
    %1222 = vmatpush1.msra.mxu0 %v1050
    %1223 = vmatprep.subr.mxu0 0.0
    %1224 = vmatpush1.msra.mxu0 %v1051
    %1225 = vmatprep.subr.mxu0 0.0
    %1226 = vmatpush1.msra.mxu0 %v1052
    %1227 = vmatprep.subr.mxu0 0.0
    %1228 = vmatpush1.msra.mxu0 %v1053
    %1229 = vmatprep.subr.mxu0 0.0
    %1230 = vmatpush1.msra.mxu0 %v1054
    %1231 = vmatprep.subr.mxu0 0.0
    %1232 = vmatpush1.msra.mxu0 %v1055
    %1233 = vmatprep.subr.mxu0 0.0
    %1234 = vmatpush1.msra.mxu0 %v1056
    %1235 = vmatprep.subr.mxu0 0.0
    %1236 = vmatpush1.msra.mxu0 %v1057
    %1237 = vmatprep.subr.mxu0 0.0
    %1238 = vmatpush1.msra.mxu0 %v1058
    %1239 = vmatprep.subr.mxu0 0.0
    %1240 = vmatpush1.msra.mxu0 %v1059
    %1241 = vmatprep.subr.mxu0 0.0
    %1242 = vmatpush1.msra.mxu0 %v1060
    %1243 = vmatprep.subr.mxu0 0.0
    %1244 = vmatpush1.msra.mxu0 %v1061
    %1245 = vmatprep.subr.mxu0 0.0
    %1246 = vmatpush1.msra.mxu0 %v1062
    %1247 = vmatprep.subr.mxu0 0.0
    %1248 = vmatpush1.msra.mxu0 %v1063
    %1249 = vmatprep.subr.mxu0 0.0
    %1250 = vmatpush1.msra.mxu0 %v1064
    %1251 = vmatprep.subr.mxu0 0.0
    %1252 = vmatpush1.msra.mxu0 %v1065
    %1253 = vmatprep.subr.mxu0 0.0
    %1254 = vmatpush1.msra.mxu0 %v1066
    %1255 = vmatprep.subr.mxu0 0.0
    %1256 = vmatpush1.msra.mxu0 %v1067
    %1257 = vmatprep.subr.mxu0 0.0
    %1258 = vmatpush1.msra.mxu0 %v1068
    %1259 = vmatprep.subr.mxu0 0.0
    %1260 = vmatpush1.msra.mxu0 %v1069
    %1261 = vmatprep.subr.mxu0 0.0
    %1262 = vmatpush1.msra.mxu0 %v1070
    %1263 = vmatprep.subr.mxu0 0.0
    %1264 = vmatpush1.msra.mxu0 %v1071
    %1265 = vmatprep.subr.mxu0 0.0
    %1266 = vmatpush1.msra.mxu0 %v1072
    %1267 = vmatprep.subr.mxu0 0.0
    %1268 = vmatpush1.msra.mxu0 %v1073
    %1269 = vmatprep.subr.mxu0 0.0
    %1270 = vmatpush1.msra.mxu0 %v1074
    %1271 = vmatprep.subr.mxu0 0.0
    %1272 = vmatpush1.msra.mxu0 %v1075
    %1273 = vmatprep.subr.mxu0 0.0
    %1274 = vmatpush1.msra.mxu0 %v1076
    %1275 = vmatprep.subr.mxu0 0.0
    %1276 = vmatpush1.msra.mxu0 %v1077
    %1277 = vmatprep.subr.mxu0 0.0
    %1278 = vmatpush1.msra.mxu0 %v1078
    %1279 = vmatprep.subr.mxu0 0.0
    %1280 = vmatpush1.msra.mxu0 %v1079
    %1281 = vmatprep.subr.mxu0 0.0
    %1282 = vmatpush1.msra.mxu0 %v1080
    %1283 = vmatprep.mubr.f32.mxu0 %v1172
    %1284 = vmatmul.mubr.f32.gmra.mrb[0].mxu0 %v1171
    %v1285 = vpop.f32.mrb[0].mxu0
    %v1286 = vadd.f32 0.0, %v1285
    %v1287 = vpop.f32.mrb[0].mxu0
    %1288 = vmatprep.mubr.f32.mxu0 %v1174
    %1289 = vmatmul.mubr.f32.gmra.mrb[0].mxu0 %v1173
    %v1290 = vpop.f32.mrb[0].mxu0
    %v1291 = vadd.f32 0.0, %v1290
    %v1292 = vpop.f32.mrb[0].mxu0
    %1293 = vmatprep.mubr.f32.mxu0 %v1176
    %1294 = vmatmul.mubr.f32.gmra.mrb[0].mxu0 %v1175
    %v1295 = vpop.f32.mrb[0].mxu0
    %v1296 = vadd.f32 0.0, %v1295
    %v1297 = vpop.f32.mrb[0].mxu0
    %1298 = vmatprep.mubr.f32.mxu0 %v1178
    %1299 = vmatmul.mubr.f32.gmra.mrb[0].mxu0 %v1177
    %v1300 = vpop.f32.mrb[0].mxu0
    %v1301 = vadd.f32 0.0, %v1300
    %v1302 = vpop.f32.mrb[0].mxu0
    %1303 = vmatprep.mubr.f32.mxu0 %v1180
    %1304 = vmatmul.mubr.f32.gmra.mrb[0].mxu0 %v1179
    %v1305 = vpop.f32.mrb[0].mxu0
    %v1306 = vadd.f32 0.0, %v1305
    %v1307 = vpop.f32.mrb[0].mxu0
    %1308 = vmatprep.mubr.f32.mxu0 %v1182
    %1309 = vmatmul.mubr.f32.gmra.mrb[0].mxu0 %v1181
    %v1310 = vpop.f32.mrb[0].mxu0
    %v1311 = vadd.f32 0.0, %v1310
    %v1312 = vpop.f32.mrb[0].mxu0
    %1313 = vmatprep.mubr.f32.mxu0 %v1184
    %1314 = vmatmul.mubr.f32.gmra.mrb[0].mxu0 %v1183
    %v1315 = vpop.f32.mrb[0].mxu0
    %v1316 = vadd.f32 0.0, %v1315
    %v1317 = vpop.f32.mrb[0].mxu0
    %1318 = vmatprep.mubr.f32.mxu0 %v1186
    %1319 = vmatmul.mubr.f32.gmra.mrb[0].mxu0 %v1185
    %v1320 = vpop.f32.mrb[0].mxu0
    %v1321 = vadd.f32 0.0, %v1320
    %v1322 = vpop.f32.mrb[0].mxu0
    %1323 = vmatprep.mubr.f32.mxu0 %v1188
    %1324 = vmatmul.mubr.f32.gmra.mrb[0].mxu0 %v1187
    %v1325 = vpop.f32.mrb[0].mxu0
    %v1326 = vadd.f32 0.0, %v1325
    %v1327 = vpop.f32.mrb[0].mxu0
    %1328 = vmatprep.mubr.f32.mxu0 %v1190
    %1329 = vmatmul.mubr.f32.gmra.mrb[0].mxu0 %v1189
    %v1330 = vpop.f32.mrb[0].mxu0
    %v1331 = vadd.f32 0.0, %v1330
    %v1332 = vpop.f32.mrb[0].mxu0
    %1333 = vmatprep.mubr.f32.mxu0 %v1192
    %1334 = vmatmul.mubr.f32.gmra.mrb[0].mxu0 %v1191
    %v1335 = vpop.f32.mrb[0].mxu0
    %v1336 = vadd.f32 0.0, %v1335
    %v1337 = vpop.f32.mrb[0].mxu0
    %1338 = vmatprep.mubr.f32.mxu0 %v1194
    %1339 = vmatmul.mubr.f32.gmra.mrb[0].mxu0 %v1193
    %v1340 = vpop.f32.mrb[0].mxu0
    %v1341 = vadd.f32 0.0, %v1340
    %v1342 = vpop.f32.mrb[0].mxu0
    %1343 = vmatprep.mubr.f32.mxu0 %v1196
    %1344 = vmatmul.mubr.f32.gmra.mrb[0].mxu0 %v1195
    %v1345 = vpop.f32.mrb[0].mxu0
    %v1346 = vadd.f32 0.0, %v1345
    %v1347 = vpop.f32.mrb[0].mxu0
    %1348 = vmatprep.mubr.f32.mxu0 %v1198
    %1349 = vmatmul.mubr.f32.gmra.mrb[0].mxu0 %v1197
    %v1350 = vpop.f32.mrb[0].mxu0
    %v1351 = vadd.f32 0.0, %v1350
    %v1352 = vpop.f32.mrb[0].mxu0
    %1353 = vmatprep.mubr.f32.mxu0 %v1200
    %1354 = vmatmul.mubr.f32.gmra.mrb[0].mxu0 %v1199
    %v1355 = vpop.f32.mrb[0].mxu0
    %v1356 = vadd.f32 0.0, %v1355
    %v1357 = vpop.f32.mrb[0].mxu0
    %1358 = vmatprep.mubr.f32.mxu0 %v1202
    %1359 = vmatmul.mubr.f32.gmra.mrb[0].mxu0 %v1201
    %v1360 = vpop.f32.mrb[0].mxu0
    %v1361 = vadd.f32 0.0, %v1360
    %v1362 = vpop.f32.mrb[0].mxu0
    %1363 = vdwg.mxu0
    %v1364 = vadd.f32 %v1203, %v1286
    %v1365 = vadd.f32 %v1204, %v1291
    %v1366 = vadd.f32 %v1205, %v1296
    %v1367 = vadd.f32 %v1206, %v1301
    %v1368 = vadd.f32 %v1207, %v1306
    %v1369 = vadd.f32 %v1208, %v1311
    %v1370 = vadd.f32 %v1209, %v1316
    %v1371 = vadd.f32 %v1210, %v1321
    %v1372 = vadd.f32 %v1211, %v1326
    %v1373 = vadd.f32 %v1212, %v1331
    %v1374 = vadd.f32 %v1213, %v1336
    %v1375 = vadd.f32 %v1214, %v1341
    %v1376 = vadd.f32 %v1215, %v1346
    %v1377 = vadd.f32 %v1216, %v1351
    %v1378 = vadd.f32 %v1217, %v1356
    %v1379 = vadd.f32 %v1218, %v1361
    %1380 = vst [vmem:[#allocation3] sm:$0xff] %v1364
    %1381 = vst [vmem:[#allocation3 + $0x8] sm:$0xff] %v1365
    %1382 = vst [vmem:[#allocation3 + $0x10] sm:$0xff] %v1366
    %1383 = vst [vmem:[#allocation3 + $0x18] sm:$0xff] %v1367
    %1384 = vst [vmem:[#allocation3 + $0x20] sm:$0xff] %v1368
    %1385 = vst [vmem:[#allocation3 + $0x28] sm:$0xff] %v1369
    %1386 = vst [vmem:[#allocation3 + $0x30] sm:$0xff] %v1370
    %1387 = vst [vmem:[#allocation3 + $0x38] sm:$0xff] %v1371
    %1388 = vst [vmem:[#allocation3 + $0x40] sm:$0xff] %v1372
    %1389 = vst [vmem:[#allocation3 + $0x48] sm:$0xff] %v1373
    %1390 = vst [vmem:[#allocation3 + $0x50] sm:$0xff] %v1374
    %1391 = vst [vmem:[#allocation3 + $0x58] sm:$0xff] %v1375
    %1392 = vst [vmem:[#allocation3 + $0x60] sm:$0xff] %v1376
    %1393 = vst [vmem:[#allocation3 + $0x68] sm:$0xff] %v1377
    %1394 = vst [vmem:[#allocation3 + $0x70] sm:$0xff] %v1378
    %1395 = vst [vmem:[#allocation3 + $0x78] sm:$0xff] %v1379
    // Predicated region
    $region42: #{tpu_custom_call.1} parent=1 // pred_check
      %p1396 = pneg %p35
    $region43: #{tpu_custom_call.1} parent=1 // pred_check_branch
      %1398 = sbr.rel (%p1396) target = $region45
    $region44: #{tpu_custom_call.1} parent=1 // pred_region
      %vm1399 = vcmp.eq.s32.totalorder %v1082, %v728
      %vm1400 = vcmp.eq.s32.totalorder %v1083, %v728
      %vm1401 = vcmp.eq.s32.totalorder %v1084, %v728
      %vm1402 = vcmp.eq.s32.totalorder %v1085, %v728
      %vm1403 = vcmp.eq.s32.totalorder %v1086, %v728
      %vm1404 = vcmp.eq.s32.totalorder %v1087, %v728
      %vm1405 = vcmp.eq.s32.totalorder %v1088, %v728
      %vm1406 = vcmp.eq.s32.totalorder %v1089, %v728
      %vm1407 = vcmp.eq.s32.totalorder %v1090, %v728
      %vm1408 = vcmp.eq.s32.totalorder %v1091, %v728
      %vm1409 = vcmp.eq.s32.totalorder %v1092, %v728
      %vm1410 = vcmp.eq.s32.totalorder %v1093, %v728
      %vm1411 = vcmp.eq.s32.totalorder %v1094, %v728
      %vm1412 = vcmp.eq.s32.totalorder %v1095, %v728
      %vm1413 = vcmp.eq.s32.totalorder %v1096, %v728
      %vm1414 = vcmp.eq.s32.totalorder %v1097, %v728
      %v1415 = vsel %vm1399, 1, 0
      %v1416 = vsel %vm1400, 1, 0
      %v1417 = vsel %vm1401, 1, 0
      %v1418 = vsel %vm1402, 1, 0
      %v1419 = vsel %vm1403, 1, 0
      %v1420 = vsel %vm1404, 1, 0
      %v1421 = vsel %vm1405, 1, 0
      %v1422 = vsel %vm1406, 1, 0
      %v1423 = vsel %vm1407, 1, 0
      %v1424 = vsel %vm1408, 1, 0
      %v1425 = vsel %vm1409, 1, 0
      %v1426 = vsel %vm1410, 1, 0
      %v1427 = vsel %vm1411, 1, 0
      %v1428 = vsel %vm1412, 1, 0
      %v1429 = vsel %vm1413, 1, 0
      %v1430 = vsel %vm1414, 1, 0
      %v1431 = vcvt.s32.f32 %v1415
      %v1432 = vcvt.s32.f32 %v1416
      %v1433 = vcvt.s32.f32 %v1417
      %v1434 = vcvt.s32.f32 %v1418
      %v1435 = vcvt.s32.f32 %v1419
      %v1436 = vcvt.s32.f32 %v1420
      %v1437 = vcvt.s32.f32 %v1421
      %v1438 = vcvt.s32.f32 %v1422
      %v1439 = vcvt.s32.f32 %v1423
      %v1440 = vcvt.s32.f32 %v1424
      %v1441 = vcvt.s32.f32 %v1425
      %v1442 = vcvt.s32.f32 %v1426
      %v1443 = vcvt.s32.f32 %v1427
      %v1444 = vcvt.s32.f32 %v1428
      %v1445 = vcvt.s32.f32 %v1429
      %v1446 = vcvt.s32.f32 %v1430
      %v1447 = vld [vmem:[#allocation3] sm:$0xff]
      %v1448 = vld [vmem:[#allocation3 + $0x8] sm:$0xff]
      %v1449 = vld [vmem:[#allocation3 + $0x10] sm:$0xff]
      %v1450 = vld [vmem:[#allocation3 + $0x18] sm:$0xff]
      %v1451 = vld [vmem:[#allocation3 + $0x20] sm:$0xff]
      %v1452 = vld [vmem:[#allocation3 + $0x28] sm:$0xff]
      %v1453 = vld [vmem:[#allocation3 + $0x30] sm:$0xff]
      %v1454 = vld [vmem:[#allocation3 + $0x38] sm:$0xff]
      %v1455 = vld [vmem:[#allocation3 + $0x40] sm:$0xff]
      %v1456 = vld [vmem:[#allocation3 + $0x48] sm:$0xff]
      %v1457 = vld [vmem:[#allocation3 + $0x50] sm:$0xff]
      %v1458 = vld [vmem:[#allocation3 + $0x58] sm:$0xff]
      %v1459 = vld [vmem:[#allocation3 + $0x60] sm:$0xff]
      %v1460 = vld [vmem:[#allocation3 + $0x68] sm:$0xff]
      %v1461 = vld [vmem:[#allocation3 + $0x70] sm:$0xff]
      %v1462 = vld [vmem:[#allocation3 + $0x78] sm:$0xff]
      %v1463 = vadd.f32 %v1447, %v1431
      %v1464 = vadd.f32 %v1448, %v1432
      %v1465 = vadd.f32 %v1449, %v1433
      %v1466 = vadd.f32 %v1450, %v1434
      %v1467 = vadd.f32 %v1451, %v1435
      %v1468 = vadd.f32 %v1452, %v1436
      %v1469 = vadd.f32 %v1453, %v1437
      %v1470 = vadd.f32 %v1454, %v1438
      %v1471 = vadd.f32 %v1455, %v1439
      %v1472 = vadd.f32 %v1456, %v1440
      %v1473 = vadd.f32 %v1457, %v1441
      %v1474 = vadd.f32 %v1458, %v1442
      %v1475 = vadd.f32 %v1459, %v1443
      %v1476 = vadd.f32 %v1460, %v1444
      %v1477 = vadd.f32 %v1461, %v1445
      %v1478 = vadd.f32 %v1462, %v1446
      %v1479 = vld [vmem:[%s7] sm:$0xff]
      %v1480 = vld [vmem:[%s7 + $0x8] sm:$0xff]
      %v1481 = vld [vmem:[%s7 + $0x10] sm:$0xff]
      %v1482 = vld [vmem:[%s7 + $0x18] sm:$0xff]
      %v1483 = vld [vmem:[%s7 + $0x20] sm:$0xff]
      %v1484 = vld [vmem:[%s7 + $0x28] sm:$0xff]
      %v1485 = vld [vmem:[%s7 + $0x30] sm:$0xff]
      %v1486 = vld [vmem:[%s7 + $0x38] sm:$0xff]
      %v1487 = vld [vmem:[%s7 + $0x40] sm:$0xff]
      %v1488 = vld [vmem:[%s7 + $0x48] sm:$0xff]
      %v1489 = vld [vmem:[%s7 + $0x50] sm:$0xff]
      %v1490 = vld [vmem:[%s7 + $0x58] sm:$0xff]
      %v1491 = vld [vmem:[%s7 + $0x60] sm:$0xff]
      %v1492 = vld [vmem:[%s7 + $0x68] sm:$0xff]
      %v1493 = vld [vmem:[%s7 + $0x70] sm:$0xff]
      %v1494 = vld [vmem:[%s7 + $0x78] sm:$0xff]
      %1496 = vset.pattern.permute.xlu0 0
      %1497 = vperm.xlu0 %1496, %v1479
      %v1498 = vpop.permute.xlu0 %1497
      %1501 = vset.pattern.permute.xlu0 0
      %1502 = vperm.xlu0 %1501, %v1480
      %v1503 = vpop.permute.xlu0 %1502
      %1506 = vset.pattern.permute.xlu0 0
      %1507 = vperm.xlu0 %1506, %v1481
      %v1508 = vpop.permute.xlu0 %1507
      %1511 = vset.pattern.permute.xlu0 0
      %1512 = vperm.xlu0 %1511, %v1482
      %v1513 = vpop.permute.xlu0 %1512
      %1516 = vset.pattern.permute.xlu0 0
      %1517 = vperm.xlu0 %1516, %v1483
      %v1518 = vpop.permute.xlu0 %1517
      %1521 = vset.pattern.permute.xlu0 0
      %1522 = vperm.xlu0 %1521, %v1484
      %v1523 = vpop.permute.xlu0 %1522
      %1526 = vset.pattern.permute.xlu0 0
      %1527 = vperm.xlu0 %1526, %v1485
      %v1528 = vpop.permute.xlu0 %1527
      %1531 = vset.pattern.permute.xlu0 0
      %1532 = vperm.xlu0 %1531, %v1486
      %v1533 = vpop.permute.xlu0 %1532
      %1536 = vset.pattern.permute.xlu0 0
      %1537 = vperm.xlu0 %1536, %v1487
      %v1538 = vpop.permute.xlu0 %1537
      %1541 = vset.pattern.permute.xlu0 0
      %1542 = vperm.xlu0 %1541, %v1488
      %v1543 = vpop.permute.xlu0 %1542
      %1546 = vset.pattern.permute.xlu0 0
      %1547 = vperm.xlu0 %1546, %v1489
      %v1548 = vpop.permute.xlu0 %1547
      %1551 = vset.pattern.permute.xlu0 0
      %1552 = vperm.xlu0 %1551, %v1490
      %v1553 = vpop.permute.xlu0 %1552
      %1556 = vset.pattern.permute.xlu0 0
      %1557 = vperm.xlu0 %1556, %v1491
      %v1558 = vpop.permute.xlu0 %1557
      %1561 = vset.pattern.permute.xlu0 0
      %1562 = vperm.xlu0 %1561, %v1492
      %v1563 = vpop.permute.xlu0 %1562
      %1566 = vset.pattern.permute.xlu0 0
      %1567 = vperm.xlu0 %1566, %v1493
      %v1568 = vpop.permute.xlu0 %1567
      %1571 = vset.pattern.permute.xlu0 0
      %1572 = vperm.xlu0 %1571, %v1494
      %v1573 = vpop.permute.xlu0 %1572
      %v1575 = vmul.f32 %v1463, %v1498
      %v1576 = vmul.f32 %v1464, %v1503
      %v1577 = vmul.f32 %v1465, %v1508
      %v1578 = vmul.f32 %v1466, %v1513
      %v1579 = vmul.f32 %v1467, %v1518
      %v1580 = vmul.f32 %v1468, %v1523
      %v1581 = vmul.f32 %v1469, %v1528
      %v1582 = vmul.f32 %v1470, %v1533
      %v1583 = vmul.f32 %v1471, %v1538
      %v1584 = vmul.f32 %v1472, %v1543
      %v1585 = vmul.f32 %v1473, %v1548
      %v1586 = vmul.f32 %v1474, %v1553
      %v1587 = vmul.f32 %v1475, %v1558
      %v1588 = vmul.f32 %v1476, %v1563
      %v1589 = vmul.f32 %v1477, %v1568
      %v1590 = vmul.f32 %v1478, %v1573
      %v1591 = vld [vmem:[%s8] sm:$0x1]
      %v1593 = vlaneseq
      %v1594 = vshrl.u32 %v1593, 7
      %v1595 = vsub.s32 0, %v1594
      %v1596 = vrot.slane %v1591, %v1595
      %v1598 = vmul.f32 %v1575, %v1596
      %v1599 = vmul.f32 %v1576, %v1596
      %v1600 = vmul.f32 %v1577, %v1596
      %v1601 = vmul.f32 %v1578, %v1596
      %v1602 = vmul.f32 %v1579, %v1596
      %v1603 = vmul.f32 %v1580, %v1596
      %v1604 = vmul.f32 %v1581, %v1596
      %v1605 = vmul.f32 %v1582, %v1596
      %v1606 = vmul.f32 %v1583, %v1596
      %v1607 = vmul.f32 %v1584, %v1596
      %v1608 = vmul.f32 %v1585, %v1596
      %v1609 = vmul.f32 %v1586, %v1596
      %v1610 = vmul.f32 %v1587, %v1596
      %v1611 = vmul.f32 %v1588, %v1596
      %v1612 = vmul.f32 %v1589, %v1596
      %v1613 = vmul.f32 %v1590, %v1596
      %v1614 = vsub.f32 %v1431, %v1598
      %v1615 = vsub.f32 %v1432, %v1599
      %v1616 = vsub.f32 %v1433, %v1600
      %v1617 = vsub.f32 %v1434, %v1601
      %v1618 = vsub.f32 %v1435, %v1602
      %v1619 = vsub.f32 %v1436, %v1603
      %v1620 = vsub.f32 %v1437, %v1604
      %v1621 = vsub.f32 %v1438, %v1605
      %v1622 = vsub.f32 %v1439, %v1606
      %v1623 = vsub.f32 %v1440, %v1607
      %v1624 = vsub.f32 %v1441, %v1608
      %v1625 = vsub.f32 %v1442, %v1609
      %v1626 = vsub.f32 %v1443, %v1610
      %v1627 = vsub.f32 %v1444, %v1611
      %v1628 = vsub.f32 %v1445, %v1612
      %v1629 = vsub.f32 %v1446, %v1613
      %1630 = vst [vmem:[#allocation3] sm:$0xff] %v1614
      %1631 = vst [vmem:[#allocation3 + $0x8] sm:$0xff] %v1615
      %1632 = vst [vmem:[#allocation3 + $0x10] sm:$0xff] %v1616
      %1633 = vst [vmem:[#allocation3 + $0x18] sm:$0xff] %v1617
      %1634 = vst [vmem:[#allocation3 + $0x20] sm:$0xff] %v1618
      %1635 = vst [vmem:[#allocation3 + $0x28] sm:$0xff] %v1619
      %1636 = vst [vmem:[#allocation3 + $0x30] sm:$0xff] %v1620
      %1637 = vst [vmem:[#allocation3 + $0x38] sm:$0xff] %v1621
      %1638 = vst [vmem:[#allocation3 + $0x40] sm:$0xff] %v1622
      %1639 = vst [vmem:[#allocation3 + $0x48] sm:$0xff] %v1623
      %1640 = vst [vmem:[#allocation3 + $0x50] sm:$0xff] %v1624
      %1641 = vst [vmem:[#allocation3 + $0x58] sm:$0xff] %v1625
      %1642 = vst [vmem:[#allocation3 + $0x60] sm:$0xff] %v1626
      %1643 = vst [vmem:[#allocation3 + $0x68] sm:$0xff] %v1627
      %1644 = vst [vmem:[#allocation3 + $0x70] sm:$0xff] %v1628
      %1645 = vst [vmem:[#allocation3 + $0x78] sm:$0xff] %v1629
    $region45: #{tpu_custom_call.1} parent=1 // pred_fallthru
      _
    // Predicated region
    $region46: #{tpu_custom_call.1} parent=1 // pred_check
      _
    $region47: #{tpu_custom_call.1} parent=1 // pred_check_branch
      %1647 = sbr.rel (0) target = $region49
    $region48: #{tpu_custom_call.1} parent=1 // pred_region
      %s1649 = ssub.s32 2048, 2048
      %1650 = vsyncadd [#allocation4], %s1649
      %s1651 = sshll.u32 [#allocation3], 4
      %s1652 = int_to_ptr.vmem [resolvable:$true] %s1651
      %1657 = dma.vmem_to_hbm [thread:$0]  %s1652, 2048, %s9, [#allocation4], 128, 128, 8
    $region49: #{tpu_custom_call.1} parent=1 // pred_fallthru
      _
    // Predicated region
    $region50: #{tpu_custom_call.1} parent=1 // pred_check
      _
    $region51: #{tpu_custom_call.1} parent=1 // pred_check_branch
      %1659 = sbr.rel (0) target = $region53
    $region52: #{tpu_custom_call.1} parent=1 // pred_region
      %1660 = dma.done [#allocation4], 2048
    $region53: #{tpu_custom_call.1} parent=1 // pred_fallthru
      _
    %1661 = vsyncpa [#allocation4], 1

</llo_original>
